<compile_context>
chip_gen: v7x
topology: tpu7x:2x2x1
jax: 0.10.0
libtpu: 0.0.40
codegen_flags: <defaults>
</compile_context>

<pallas_src>
import functools
import math

import jax
import jax.numpy as jnp
from jax import lax
from jax.experimental import pallas as pl
from jax.experimental.pallas import tpu as pltpu


def _dsa_kernel(scale_factor,
                x_ref, wqkv_ref, qb_ref, vb_ref, rel_ref,
                wpk_ref, wpq_ref, pqb_ref,
                c2p_idx_ref, p2c_idx_t_ref, mask_ref,
                o_ref):
    """One (batch, head) grid point of disentangled self-attention.

    x_ref:         (N, H)       hidden states for this batch
    wqkv_ref:      (3*dh, H)    interleaved [q;k;v] rows of in_proj for this head
    qb_ref/vb_ref: (1, dh)      q / v bias slice for this head
    rel_ref:       (2*span, H)  sliced relative-position embeddings
    wpk_ref:       (dh, H)      pos_proj rows for this head   (c2p keys)
    wpq_ref:       (dh, H)      pos_q_proj rows for this head (p2c queries)
    pqb_ref:       (1, dh)      pos_q_proj bias slice for this head
    c2p_idx_ref:   (N, N) i32   clamp(rel_pos + span, 0, 2*span-1)
    p2c_idx_t_ref: (N, N) i32   clamp(-rel_pos + span, 0, 2*span-1), pre-transposed
    mask_ref:      (N, N) i32   1 = token i may attend to token j
    o_ref:         (N, dh)      context output for this (batch, head)
    """
    n = x_ref.shape[0]
    dh = wpk_ref.shape[0]
    two_span = rel_ref.shape[0]
    scale_inv = 1.0 / math.sqrt(dh * scale_factor)

    # Contract on the in-feature axis of both operands (a @ b.T) — weights stay
    # in native (out, in) layout, no transpose materialized anywhere.
    dn = (((1,), (1,)), ((), ()))

    x = x_ref[...]                       # fed at native dtype; MXU accumulates f32
    w = wqkv_ref[...]
    q = lax.dot_general(x, w[0:dh], dn, preferred_element_type=jnp.float32)
    k = lax.dot_general(x, w[dh:2 * dh], dn, preferred_element_type=jnp.float32)
    v = lax.dot_general(x, w[2 * dh:3 * dh], dn, preferred_element_type=jnp.float32)
    q = (q + qb_ref[...]) * scale_inv    # bias first, then 1/sqrt(dh*scale_factor)
    v = v + vb_ref[...]

    # content-to-content scores
    scores = lax.dot_general(q, k, dn, preferred_element_type=jnp.float32)    # (N, N)

    rel = rel_ref[...]
    buckets = lax.broadcasted_iota(jnp.int32, (n, n, two_span), 2)

    # c2p: pos_key = rel_emb @ W_pos^T ; bias[i, j] = q[i] . pos_key[c2p_idx[i, j]]
    pos_k = lax.dot_general(rel, wpk_ref[...], dn,
                            preferred_element_type=jnp.float32)               # (2s, dh)
    c2p_full = lax.dot_general(q, pos_k, dn,
                               preferred_element_type=jnp.float32)            # (N, 2s)
    oh_c2p = (c2p_idx_ref[...][:, :, None] == buckets).astype(jnp.float32)
    rel_c2p = jnp.sum(c2p_full[:, None, :] * oh_c2p, axis=-1)                 # (N, N)

    # p2c: pos_q = (rel_emb @ W_q^T + b) * scale_inv
    #      bias[i, j] = k[j] . pos_q[p2c_idx_t[i, j]]   (transpose folded into idx)
    pos_q = lax.dot_general(rel, wpq_ref[...], dn,
                            preferred_element_type=jnp.float32)
    pos_q = (pos_q + pqb_ref[...]) * scale_inv
    p2c_full = lax.dot_general(k, pos_q, dn,
                               preferred_element_type=jnp.float32)            # (N, 2s)
    oh_p2c = (p2c_idx_t_ref[...][:, :, None] == buckets).astype(jnp.float32)
    rel_p2c = jnp.sum(p2c_full[None, :, :] * oh_p2c, axis=-1)                 # (N, N)

    scores = scores + rel_c2p + rel_p2c

    neg = jnp.finfo(jnp.float32).min
    scores = jnp.where(mask_ref[...] != 0, scores, neg)

    # numerically stable softmax
    m = jnp.max(scores, axis=-1, keepdims=True)
    e = jnp.exp(scores - m)
    probs = e / jnp.sum(e, axis=-1, keepdims=True)

    ctx = lax.dot_general(probs, v, (((1,), (0,)), ((), ())),
                          preferred_element_type=jnp.float32)                 # (N, dh)
    o_ref[...] = ctx.astype(o_ref.dtype)


def disentangled_self_attention(hidden_states, attention_mask,
                                in_proj_weight, q_bias, v_bias,
                                pos_proj_weight, pos_q_proj_weight,
                                pos_q_proj_bias, rel_embeddings,
                                relative_pos=None, *,
                                num_attention_heads, max_relative_positions):
    """Eval-mode DisentangledSelfAttention forward (pos_att_type = c2p + p2c)."""
    B, N, H = hidden_states.shape
    nh = num_attention_heads
    dh = H // nh
    scale_factor = 3                      # 1 + len(["c2p", "p2c"])

    if relative_pos is None:
        ids = jnp.arange(N, dtype=jnp.int32)
        relative_pos = ids[:, None] - ids[None, :]          # (N, N)
    else:
        relative_pos = relative_pos.reshape(-1, N, N)[0]
    relative_pos = relative_pos.astype(jnp.int32)

    span = min(N, max_relative_positions)
    rel_sl = rel_embeddings[max_relative_positions - span:
                            max_relative_positions + span, :]        # (2*span, H)

    c2p_idx = jnp.clip(relative_pos + span, 0, 2 * span - 1).astype(jnp.int32)
    p2c_idx_t = jnp.clip(-relative_pos + span, 0, 2 * span - 1).astype(jnp.int32).T
    mask = attention_mask.reshape(B, N, N).astype(jnp.int32)

    qb = q_bias.reshape(nh, 1, dh)
    vb = v_bias.reshape(nh, 1, dh)
    pqb = pos_q_proj_bias.reshape(nh, 1, dh)

    # Advisory cost hint for XLA scheduling around the custom call.
    two_span = 2 * span
    flops_per_bh = (6 * N * H * dh + 4 * two_span * H * dh + 4 * N * N * dh
                    + 4 * N * two_span * dh + 4 * N * N * two_span)
    cost = pl.CostEstimate(
        flops=B * nh * flops_per_bh,
        transcendentals=B * nh * N * N,
        bytes_accessed=4 * (2 * B * N * H + 3 * H * H + H * H + H * H
                            + two_span * H + 3 * H + 2 * N * N + B * N * N),
    )

    ctx = pl.pallas_call(
        functools.partial(_dsa_kernel, scale_factor),
        out_shape=jax.ShapeDtypeStruct((B, nh, N, dh), hidden_states.dtype),
        grid=(B, nh),
        in_specs=[
            pl.BlockSpec((None, N, H), lambda b, h: (b, 0, 0)),      # hidden_states
            pl.BlockSpec((3 * dh, H), lambda b, h: (h, 0)),          # in_proj weight (native layout)
            pl.BlockSpec((None, 1, dh), lambda b, h: (h, 0, 0)),     # q_bias slice
            pl.BlockSpec((None, 1, dh), lambda b, h: (h, 0, 0)),     # v_bias slice
            pl.BlockSpec((2 * span, H), lambda b, h: (0, 0)),        # rel embeddings slice
            pl.BlockSpec((dh, H), lambda b, h: (h, 0)),              # pos_proj weight
            pl.BlockSpec((dh, H), lambda b, h: (h, 0)),              # pos_q_proj weight
            pl.BlockSpec((None, 1, dh), lambda b, h: (h, 0, 0)),     # pos_q_proj bias slice
            pl.BlockSpec((N, N), lambda b, h: (0, 0)),               # c2p index
            pl.BlockSpec((N, N), lambda b, h: (0, 0)),               # p2c index (pre-transposed)
            pl.BlockSpec((None, N, N), lambda b, h: (b, 0, 0)),      # attention mask
        ],
        out_specs=pl.BlockSpec((None, None, N, dh), lambda b, h: (b, h, 0, 0)),
        compiler_params=pltpu.CompilerParams(
            dimension_semantics=("parallel", "parallel")),
        cost_estimate=cost,
    )(hidden_states, in_proj_weight, qb, vb, rel_sl,
      pos_proj_weight, pos_q_proj_weight, pqb, c2p_idx, p2c_idx_t, mask)

    # (B, nh, N, dh) -> (B, N, H), matching the module's permute + view.
    return jnp.transpose(ctx, (0, 2, 1, 3)).reshape(B, N, H)


def _reference(hidden_states, attention_mask, in_proj_weight, q_bias, v_bias,
               pos_proj_weight, pos_q_proj_weight, pos_q_proj_bias,
               rel_embeddings, num_attention_heads, max_relative_positions):
    """Pure-JAX transcription of the PyTorch forward (eval, c2p+p2c)."""
    hp = lax.Precision.HIGHEST
    B, N, H = hidden_states.shape
    nh = num_attention_heads
    dh = H // nh
    scale = math.sqrt(dh * 3)

    qp = jnp.einsum('bnh,oh->bno', hidden_states, in_proj_weight, precision=hp)
    qp = qp.reshape(B, N, nh, 3 * dh).transpose(0, 2, 1, 3)       # (B, nh, N, 3dh)
    q, k, v = qp[..., :dh], qp[..., dh:2 * dh], qp[..., 2 * dh:]
    q = q + q_bias.reshape(nh, dh)[None, :, None, :]
    v = v + v_bias.reshape(nh, dh)[None, :, None, :]
    q = q / scale
    scores = jnp.einsum('bhqd,bhkd->bhqk', q, k, precision=hp)

    span = min(N, max_relative_positions)
    rel = rel_embeddings[max_relative_positions - span: max_relative_positions + span]
    ids = jnp.arange(N, dtype=jnp.int32)
    rel_pos = ids[:, None] - ids[None, :]

    pos_key = jnp.einsum('sh,oh->so', rel, pos_proj_weight, precision=hp)
    pos_key = pos_key.reshape(2 * span, nh, dh).transpose(1, 0, 2)
    c2p_att = jnp.einsum('bhqd,hsd->bhqs', q, pos_key, precision=hp)
    c2p_pos = jnp.clip(rel_pos + span, 0, 2 * span - 1)
    c2p = jnp.take_along_axis(c2p_att, jnp.broadcast_to(c2p_pos, (B, nh, N, N)), axis=-1)

    pos_query = jnp.einsum('sh,oh->so', rel, pos_q_proj_weight, precision=hp) + pos_q_proj_bias
    pos_query = pos_query.reshape(2 * span, nh, dh).transpose(1, 0, 2) / scale
    p2c_att = jnp.einsum('bhkd,hsd->bhks', k, pos_query, precision=hp)
    p2c_pos = jnp.clip(-rel_pos + span, 0, 2 * span - 1)
    p2c = jnp.take_along_axis(p2c_att, jnp.broadcast_to(p2c_pos, (B, nh, N, N)), axis=-1)
    p2c = jnp.swapaxes(p2c, -1, -2)

    scores = scores + c2p + p2c
    scores = jnp.where(attention_mask[:, None, :, :] != 0, scores,
                       jnp.finfo(jnp.float32).min)
    probs = jax.nn.softmax(scores, axis=-1)
    ctx = jnp.einsum('bhqk,bhkd->bhqd', probs, v, precision=hp)
    return ctx.transpose(0, 2, 1, 3).reshape(B, N, H)


if __name__ == "__main__":
    B, N, H, nh = 2, 8, 32, 4
    dh = H // nh
    max_rel = 16

    key = jax.random.PRNGKey(0)
    keys = jax.random.split(key, 8)
    hidden = jax.random.normal(keys[0], (B, N, H), dtype=jnp.float32)
    bound = 1.0 / math.sqrt(H)
    in_proj_w = jax.random.uniform(keys[1], (3 * H, H), minval=-bound, maxval=bound,
                                   dtype=jnp.float32)
    pos_proj_w = jax.random.uniform(keys[2], (H, H), minval=-bound, maxval=bound,
                                    dtype=jnp.float32)
    pos_q_proj_w = jax.random.uniform(keys[3], (H, H), minval=-bound, maxval=bound,
                                      dtype=jnp.float32)
    pos_q_proj_b = jax.random.uniform(keys[4], (H,), minval=-bound, maxval=bound,
                                      dtype=jnp.float32)
    q_bias = 0.02 * jax.random.normal(keys[5], (H,), dtype=jnp.float32)
    v_bias = 0.02 * jax.random.normal(keys[6], (H,), dtype=jnp.float32)
    rel_emb = 0.1 * jax.random.normal(keys[7], (2 * max_rel, H), dtype=jnp.float32)

    # [B, N, N] mask: element [i, j] = 1 means token i may attend to token j.
    lengths = jnp.array([N, 5], dtype=jnp.int32)
    valid = (jnp.arange(N)[None, :] < lengths[:, None]).astype(jnp.int32)   # (B, N)
    attention_mask = valid[:, :, None] * valid[:, None, :]                  # (B, N, N)

    out = disentangled_self_attention(
        hidden, attention_mask, in_proj_w, q_bias, v_bias,
        pos_proj_w, pos_q_proj_w, pos_q_proj_b, rel_emb,
        num_attention_heads=nh, max_relative_positions=max_rel)
    out = jax.block_until_ready(out)

    ref = _reference(hidden, attention_mask, in_proj_w, q_bias, v_bias,
                     pos_proj_w, pos_q_proj_w, pos_q_proj_b, rel_emb,
                     nh, max_rel)

    assert out.shape == (B, N, H)
    max_diff = float(jnp.max(jnp.abs(out - ref)))
    assert jnp.allclose(out, ref, atol=2e-3, rtol=2e-3), f"max diff {max_diff}"

    print("KERNEL_OK")
</pallas_src>

<mosaic_0001>
module attributes {stable_mosaic.version = 11 : i64} {
  func.func @_dsa_kernel(%arg0: i32, %arg1: i32, %arg2: memref<1x8x32xf32, #tpu.memory_space<vmem>>, %arg3: memref<24x32xf32, #tpu.memory_space<vmem>>, %arg4: memref<1x1x8xf32, #tpu.memory_space<vmem>>, %arg5: memref<1x1x8xf32, #tpu.memory_space<vmem>>, %arg6: memref<16x32xf32, #tpu.memory_space<vmem>>, %arg7: memref<8x32xf32, #tpu.memory_space<vmem>>, %arg8: memref<8x32xf32, #tpu.memory_space<vmem>>, %arg9: memref<1x1x8xf32, #tpu.memory_space<vmem>>, %arg10: memref<8x8xi32, #tpu.memory_space<vmem>>, %arg11: memref<8x8xi32, #tpu.memory_space<vmem>>, %arg12: memref<1x8x8xi32, #tpu.memory_space<vmem>>, %arg13: memref<1x1x8x8xf32, #tpu.memory_space<vmem>>) attributes {dimension_semantics = [#tpu.dimension_semantics<parallel>, #tpu.dimension_semantics<parallel>], iteration_bounds = array<i64: 2, 4>, scalar_prefetch = 0 : i64, scratch_operands = 0 : i64, tpu.core_type = #tpu.core_type<tc>, window_params = [{transform_indices = @transform_0, window_bounds = array<i64: 1, 8, 32>}, {transform_indices = @transform_1, window_bounds = array<i64: 24, 32>}, {transform_indices = @transform_2, window_bounds = array<i64: 1, 1, 8>}, {transform_indices = @transform_3, window_bounds = array<i64: 1, 1, 8>}, {pipeline_mode = #tpu.pipeline_mode<synchronous>, transform_indices = @transform_4, window_bounds = array<i64: 16, 32>}, {transform_indices = @transform_5, window_bounds = array<i64: 8, 32>}, {transform_indices = @transform_6, window_bounds = array<i64: 8, 32>}, {transform_indices = @transform_7, window_bounds = array<i64: 1, 1, 8>}, {pipeline_mode = #tpu.pipeline_mode<synchronous>, transform_indices = @transform_8, window_bounds = array<i64: 8, 8>}, {pipeline_mode = #tpu.pipeline_mode<synchronous>, transform_indices = @transform_9, window_bounds = array<i64: 8, 8>}, {transform_indices = @transform_10, window_bounds = array<i64: 1, 8, 8>}, {transform_indices = @transform_11, window_bounds = array<i64: 1, 1, 8, 8>}]} {
    %c0 = arith.constant 0 : index
    %c0_0 = arith.constant 0 : index
    %c0_1 = arith.constant 0 : index
    %0 = vector.load %arg2[%c0, %c0_0, %c0_1] : memref<1x8x32xf32, #tpu.memory_space<vmem>>, vector<1x8x32xf32>
    %1 = vector.shape_cast %0 : vector<1x8x32xf32> to vector<8x32xf32>
    %c0_2 = arith.constant 0 : index
    %c0_3 = arith.constant 0 : index
    %2 = vector.load %arg3[%c0_2, %c0_3] : memref<24x32xf32, #tpu.memory_space<vmem>>, vector<24x32xf32>
    %3 = vector.extract_strided_slice %2 {offsets = [0, 0], sizes = [8, 32], strides = [1, 1]} : vector<24x32xf32> to vector<8x32xf32>
    %cst = arith.constant dense<0.000000e+00> : vector<8x8xf32>
    %4 = tpu.matmul %1, %3, %cst {dimension_numbers = #tpu.dot_dimension_numbers<[1], [1], [0], [0], [0, 0, 1, 0], [], []>} : vector<8x32xf32>, vector<8x32xf32>, vector<8x8xf32> -> vector<8x8xf32>
    %5 = vector.extract_strided_slice %2 {offsets = [8, 0], sizes = [8, 32], strides = [1, 1]} : vector<24x32xf32> to vector<8x32xf32>
    %cst_4 = arith.constant dense<0.000000e+00> : vector<8x8xf32>
    %6 = tpu.matmul %1, %5, %cst_4 {dimension_numbers = #tpu.dot_dimension_numbers<[1], [1], [0], [0], [0, 0, 1, 0], [], []>} : vector<8x32xf32>, vector<8x32xf32>, vector<8x8xf32> -> vector<8x8xf32>
    %7 = vector.extract_strided_slice %2 {offsets = [16, 0], sizes = [8, 32], strides = [1, 1]} : vector<24x32xf32> to vector<8x32xf32>
    %cst_5 = arith.constant dense<0.000000e+00> : vector<8x8xf32>
    %8 = tpu.matmul %1, %7, %cst_5 {dimension_numbers = #tpu.dot_dimension_numbers<[1], [1], [0], [0], [0, 0, 1, 0], [], []>} : vector<8x32xf32>, vector<8x32xf32>, vector<8x8xf32> -> vector<8x8xf32>
    %c0_6 = arith.constant 0 : index
    %c0_7 = arith.constant 0 : index
    %c0_8 = arith.constant 0 : index
    %9 = vector.load %arg4[%c0_6, %c0_7, %c0_8] : memref<1x1x8xf32, #tpu.memory_space<vmem>>, vector<1x1x8xf32>
    %10 = vector.shape_cast %9 : vector<1x1x8xf32> to vector<1x8xf32>
    %11 = vector.broadcast %10 : vector<1x8xf32> to vector<8x8xf32>
    %12 = arith.addf %4, %11 : vector<8x8xf32>
    %cst_9 = arith.constant 0.204124153 : f32
    %13 = vector.broadcast %cst_9 : f32 to vector<8x8xf32>
    %14 = arith.mulf %12, %13 : vector<8x8xf32>
    %c0_10 = arith.constant 0 : index
    %c0_11 = arith.constant 0 : index
    %c0_12 = arith.constant 0 : index
    %15 = vector.load %arg5[%c0_10, %c0_11, %c0_12] : memref<1x1x8xf32, #tpu.memory_space<vmem>>, vector<1x1x8xf32>
    %16 = vector.shape_cast %15 : vector<1x1x8xf32> to vector<1x8xf32>
    %17 = vector.broadcast %16 : vector<1x8xf32> to vector<8x8xf32>
    %18 = arith.addf %8, %17 : vector<8x8xf32>
    %cst_13 = arith.constant dense<0.000000e+00> : vector<8x8xf32>
    %19 = tpu.matmul %14, %6, %cst_13 {dimension_numbers = #tpu.dot_dimension_numbers<[1], [1], [0], [0], [0, 0, 1, 0], [], []>} : vector<8x8xf32>, vector<8x8xf32>, vector<8x8xf32> -> vector<8x8xf32>
    %c0_14 = arith.constant 0 : index
    %c0_15 = arith.constant 0 : index
    %20 = vector.load %arg6[%c0_14, %c0_15] : memref<16x32xf32, #tpu.memory_space<vmem>>, vector<16x32xf32>
    %21 = tpu.iota {dimensions = array<i32: 2>} : vector<8x8x16xi32>
    %c0_16 = arith.constant 0 : index
    %c0_17 = arith.constant 0 : index
    %22 = vector.load %arg7[%c0_16, %c0_17] : memref<8x32xf32, #tpu.memory_space<vmem>>, vector<8x32xf32>
    %cst_18 = arith.constant dense<0.000000e+00> : vector<16x8xf32>
    %23 = tpu.matmul %20, %22, %cst_18 {dimension_numbers = #tpu.dot_dimension_numbers<[1], [1], [0], [0], [0, 0, 1, 0], [], []>} : vector<16x32xf32>, vector<8x32xf32>, vector<16x8xf32> -> vector<16x8xf32>
    %cst_19 = arith.constant dense<0.000000e+00> : vector<8x16xf32>
    %24 = tpu.matmul %14, %23, %cst_19 {dimension_numbers = #tpu.dot_dimension_numbers<[1], [1], [0], [0], [0, 0, 1, 0], [], []>} : vector<8x8xf32>, vector<16x8xf32>, vector<8x16xf32> -> vector<8x16xf32>
    %c0_20 = arith.constant 0 : index
    %c0_21 = arith.constant 0 : index
    %25 = vector.load %arg10[%c0_20, %c0_21] : memref<8x8xi32, #tpu.memory_space<vmem>>, vector<8x8xi32>
    %26 = vector.shape_cast %25 : vector<8x8xi32> to vector<8x8x1xi32>
    %27 = vector.broadcast %26 : vector<8x8x1xi32> to vector<8x8x16xi32>
    %28 = arith.cmpi eq, %27, %21 : vector<8x8x16xi32>
    %29 = arith.extui %28 : vector<8x8x16xi1> to vector<8x8x16xi32>
    %30 = arith.sitofp %29 : vector<8x8x16xi32> to vector<8x8x16xf32>
    %31 = vector.shape_cast %24 : vector<8x16xf32> to vector<8x1x16xf32>
    %32 = vector.broadcast %31 : vector<8x1x16xf32> to vector<8x8x16xf32>
    %33 = arith.mulf %32, %30 : vector<8x8x16xf32>
    %cst_22 = arith.constant dense<0.000000e+00> : vector<8x8xf32>
    %34 = vector.multi_reduction <add>, %33, %cst_22 [2] : vector<8x8x16xf32> to vector<8x8xf32>
    %c0_23 = arith.constant 0 : index
    %c0_24 = arith.constant 0 : index
    %35 = vector.load %arg8[%c0_23, %c0_24] : memref<8x32xf32, #tpu.memory_space<vmem>>, vector<8x32xf32>
    %cst_25 = arith.constant dense<0.000000e+00> : vector<16x8xf32>
    %36 = tpu.matmul %20, %35, %cst_25 {dimension_numbers = #tpu.dot_dimension_numbers<[1], [1], [0], [0], [0, 0, 1, 0], [], []>} : vector<16x32xf32>, vector<8x32xf32>, vector<16x8xf32> -> vector<16x8xf32>
    %c0_26 = arith.constant 0 : index
    %c0_27 = arith.constant 0 : index
    %c0_28 = arith.constant 0 : index
    %37 = vector.load %arg9[%c0_26, %c0_27, %c0_28] : memref<1x1x8xf32, #tpu.memory_space<vmem>>, vector<1x1x8xf32>
    %38 = vector.shape_cast %37 : vector<1x1x8xf32> to vector<1x8xf32>
    %39 = vector.broadcast %38 : vector<1x8xf32> to vector<16x8xf32>
    %40 = arith.addf %36, %39 : vector<16x8xf32>
    %cst_29 = arith.constant 0.204124153 : f32
    %41 = vector.broadcast %cst_29 : f32 to vector<16x8xf32>
    %42 = arith.mulf %40, %41 : vector<16x8xf32>
    %cst_30 = arith.constant dense<0.000000e+00> : vector<8x16xf32>
    %43 = tpu.matmul %6, %42, %cst_30 {dimension_numbers = #tpu.dot_dimension_numbers<[1], [1], [0], [0], [0, 0, 1, 0], [], []>} : vector<8x8xf32>, vector<16x8xf32>, vector<8x16xf32> -> vector<8x16xf32>
    %c0_31 = arith.constant 0 : index
    %c0_32 = arith.constant 0 : index
    %44 = vector.load %arg11[%c0_31, %c0_32] : memref<8x8xi32, #tpu.memory_space<vmem>>, vector<8x8xi32>
    %45 = vector.shape_cast %44 : vector<8x8xi32> to vector<8x8x1xi32>
    %46 = vector.broadcast %45 : vector<8x8x1xi32> to vector<8x8x16xi32>
    %47 = arith.cmpi eq, %46, %21 : vector<8x8x16xi32>
    %48 = arith.extui %47 : vector<8x8x16xi1> to vector<8x8x16xi32>
    %49 = arith.sitofp %48 : vector<8x8x16xi32> to vector<8x8x16xf32>
    %50 = vector.shape_cast %43 : vector<8x16xf32> to vector<1x8x16xf32>
    %51 = vector.broadcast %50 : vector<1x8x16xf32> to vector<8x8x16xf32>
    %52 = arith.mulf %51, %49 : vector<8x8x16xf32>
    %cst_33 = arith.constant dense<0.000000e+00> : vector<8x8xf32>
    %53 = vector.multi_reduction <add>, %52, %cst_33 [2] : vector<8x8x16xf32> to vector<8x8xf32>
    %54 = arith.addf %19, %34 : vector<8x8xf32>
    %55 = arith.addf %54, %53 : vector<8x8xf32>
    %c0_34 = arith.constant 0 : index
    %c0_35 = arith.constant 0 : index
    %c0_36 = arith.constant 0 : index
    %56 = vector.load %arg12[%c0_34, %c0_35, %c0_36] : memref<1x8x8xi32, #tpu.memory_space<vmem>>, vector<1x8x8xi32>
    %57 = vector.shape_cast %56 : vector<1x8x8xi32> to vector<8x8xi32>
    %c0_i32 = arith.constant 0 : i32
    %58 = vector.broadcast %c0_i32 : i32 to vector<8x8xi32>
    %59 = arith.cmpi ne, %57, %58 : vector<8x8xi32>
    %cst_37 = arith.constant -3.40282347E+38 : f32
    %60 = vector.broadcast %cst_37 : f32 to vector<8x8xf32>
    %61 = arith.select %59, %55, %60 : vector<8x8xi1>, vector<8x8xf32>
    %cst_38 = arith.constant dense<0xFF800000> : vector<8xf32>
    %62 = vector.multi_reduction <maximumf>, %61, %cst_38 [1] : vector<8x8xf32> to vector<8xf32>
    %63 = vector.shape_cast %62 : vector<8xf32> to vector<8x1xf32>
    %64 = vector.broadcast %63 : vector<8x1xf32> to vector<8x8xf32>
    %65 = arith.subf %61, %64 : vector<8x8xf32>
    %66 = math.exp %65 : vector<8x8xf32>
    %cst_39 = arith.constant dense<0.000000e+00> : vector<8xf32>
    %67 = vector.multi_reduction <add>, %66, %cst_39 [1] : vector<8x8xf32> to vector<8xf32>
    %68 = vector.shape_cast %67 : vector<8xf32> to vector<8x1xf32>
    %69 = vector.broadcast %68 : vector<8x1xf32> to vector<8x8xf32>
    %70 = arith.divf %66, %69 : vector<8x8xf32>
    %cst_40 = arith.constant dense<0.000000e+00> : vector<8x8xf32>
    %71 = tpu.matmul %70, %18, %cst_40 {dimension_numbers = #tpu.dot_dimension_numbers<[1], [0], [0], [1], [0, 0, 1, 1], [], []>} : vector<8x8xf32>, vector<8x8xf32>, vector<8x8xf32> -> vector<8x8xf32>
    %c0_41 = arith.constant 0 : index
    %c0_42 = arith.constant 0 : index
    %c0_43 = arith.constant 0 : index
    %c0_44 = arith.constant 0 : index
    %72 = vector.load %arg13[%c0_41, %c0_42, %c0_43, %c0_44] : memref<1x1x8x8xf32, #tpu.memory_space<vmem>>, vector<1x1x8x8xf32>
    %73 = vector.shape_cast %72 : vector<1x1x8x8xf32> to vector<8x8xf32>
    %74 = vector.shape_cast %71 : vector<8x8xf32> to vector<1x1x8x8xf32>
    tpu.vector_store %arg13[%c0_41, %c0_42, %c0_43, %c0_44], %74 {strides = array<i32>} : memref<1x1x8x8xf32, #tpu.memory_space<vmem>>, vector<1x1x8x8xf32>,
    return
  }
  func.func @transform_0(%arg0: i32, %arg1: i32) -> (i32, i32, i32) {
    %c0_i32 = arith.constant 0 : i32
    %c0_i32_0 = arith.constant 0 : i32
    %c0_i32_1 = arith.constant 0 : i32
    return %arg0, %c0_i32, %c0_i32_0 : i32, i32, i32
  }
  func.func @transform_1(%arg0: i32, %arg1: i32) -> (i32, i32) {
    %c0_i32 = arith.constant 0 : i32
    %c0_i32_0 = arith.constant 0 : i32
    return %arg1, %c0_i32 : i32, i32
  }
  func.func @transform_2(%arg0: i32, %arg1: i32) -> (i32, i32, i32) {
    %c0_i32 = arith.constant 0 : i32
    %c0_i32_0 = arith.constant 0 : i32
    %c0_i32_1 = arith.constant 0 : i32
    return %arg1, %c0_i32, %c0_i32_0 : i32, i32, i32
  }
  func.func @transform_3(%arg0: i32, %arg1: i32) -> (i32, i32, i32) {
    %c0_i32 = arith.constant 0 : i32
    %c0_i32_0 = arith.constant 0 : i32
    %c0_i32_1 = arith.constant 0 : i32
    return %arg1, %c0_i32, %c0_i32_0 : i32, i32, i32
  }
  func.func @transform_4(%arg0: i32, %arg1: i32) -> (i32, i32) {
    %c0_i32 = arith.constant 0 : i32
    %c0_i32_0 = arith.constant 0 : i32
    %c0_i32_1 = arith.constant 0 : i32
    return %c0_i32, %c0_i32_0 : i32, i32
  }
  func.func @transform_5(%arg0: i32, %arg1: i32) -> (i32, i32) {
    %c0_i32 = arith.constant 0 : i32
    %c0_i32_0 = arith.constant 0 : i32
    return %arg1, %c0_i32 : i32, i32
  }
  func.func @transform_6(%arg0: i32, %arg1: i32) -> (i32, i32) {
    %c0_i32 = arith.constant 0 : i32
    %c0_i32_0 = arith.constant 0 : i32
    return %arg1, %c0_i32 : i32, i32
  }
  func.func @transform_7(%arg0: i32, %arg1: i32) -> (i32, i32, i32) {
    %c0_i32 = arith.constant 0 : i32
    %c0_i32_0 = arith.constant 0 : i32
    %c0_i32_1 = arith.constant 0 : i32
    return %arg1, %c0_i32, %c0_i32_0 : i32, i32, i32
  }
  func.func @transform_8(%arg0: i32, %arg1: i32) -> (i32, i32) {
    %c0_i32 = arith.constant 0 : i32
    %c0_i32_0 = arith.constant 0 : i32
    %c0_i32_1 = arith.constant 0 : i32
    return %c0_i32, %c0_i32_0 : i32, i32
  }
  func.func @transform_9(%arg0: i32, %arg1: i32) -> (i32, i32) {
    %c0_i32 = arith.constant 0 : i32
    %c0_i32_0 = arith.constant 0 : i32
    %c0_i32_1 = arith.constant 0 : i32
    return %c0_i32, %c0_i32_0 : i32, i32
  }
  func.func @transform_10(%arg0: i32, %arg1: i32) -> (i32, i32, i32) {
    %c0_i32 = arith.constant 0 : i32
    %c0_i32_0 = arith.constant 0 : i32
    %c0_i32_1 = arith.constant 0 : i32
    return %arg0, %c0_i32, %c0_i32_0 : i32, i32, i32
  }
  func.func @transform_11(%arg0: i32, %arg1: i32) -> (i32, i32, i32, i32) {
    %c0_i32 = arith.constant 0 : i32
    %c0_i32_0 = arith.constant 0 : i32
    %c0_i32_1 = arith.constant 0 : i32
    return %arg0, %arg1, %c0_i32, %c0_i32_0 : i32, i32, i32, i32
  }
}

</mosaic_0001>

<llo_original>
// kernel: tpu_custom_call.1
$region0: #{tpu_custom_call.1}
  #allocation0 [shape = 'u32[]', space=smem, size = 0x4, offset = 0x4, fixed_abs, tag = 'smem constant byte address 0x4 - core index']
  #allocation1 [shape = 'u32[144,128]{1,0:T(1,128)}', space=vmem, size = 0x12000, scoped, tag = 'internal scratch']
  %s0 = inlined_call_operand.vmem [shape: f32[2,8,32], index: 0, kind: input, shape index: {}]
  %s1 = inlined_call_operand.vmem [shape: f32[96,32], index: 1, kind: input, shape index: {}]
  %s2 = inlined_call_operand.vmem [shape: f32[4,1,8], index: 2, kind: input, shape index: {}]
  %s3 = inlined_call_operand.vmem [shape: f32[4,1,8], index: 3, kind: input, shape index: {}]
  %s4 = inlined_call_operand.vmem [shape: f32[16,32], index: 4, kind: input, shape index: {}]
  %s5 = inlined_call_operand.vmem [shape: f32[32,32], index: 5, kind: input, shape index: {}]
  %s6 = inlined_call_operand.vmem [shape: f32[32,32], index: 6, kind: input, shape index: {}]
  %s7 = inlined_call_operand.vmem [shape: f32[4,1,8], index: 7, kind: input, shape index: {}]
  %s8 = inlined_call_operand.vmem [shape: s32[8,8], index: 8, kind: input, shape index: {}]
  %s9 = inlined_call_operand.vmem [shape: s32[8,8], index: 9, kind: input, shape index: {}]
  %s10 = inlined_call_operand.vmem [shape: s32[2,8,8], index: 10, kind: input, shape index: {}]
  %s11 = inlined_call_operand.hbm [shape: f32[2,4,8,8], index: 11, kind: output, shape index: {}]
  %s12 = sld [smem:[#allocation0]]
  $region77: #{tpu_custom_call.1} parent=0
    _
  %s14 = ssub.s32 1, %s12
  %s15 = scalar_select 0, %s14, %s12
  $region1: #{tpu_custom_call.1} parent=0
    #allocation2 [shape = 'u8[8192]{0}', space=vmem, size = 0x2000, scoped, tag = 'output window, operand 0']
    #allocation3 [shape = 's32[2]{0}', space=sflag, size = 0x8, scoped, tag = 'scoped memory for tpu_custom_call.1']
    %16 = vsyncpa [#allocation3], 0
    %s17 = scalar_lea.sflag [#allocation3], 1
    %18 = vsyncpa %s17, 0
    loop: start=0, step=1, limit=10
    $region2: #{tpu_custom_call.1} parent=1 // loop_pre_header
      _
    $region3: #{tpu_custom_call.1} parent=1 // loop_header
      %s20 = sphi 0, %s24
      %p21 = scmp.ge.s32.totalorder %s20, 10
      %s27 = sphi 0, %s39
      %s28 = sphi 0, %s35
      %s29 = sphi 0, %s27
      %s30 = sphi 0, %s28
      %s31 = sphi 0, %s29
      %s32 = sphi 0, %s30
      %s42 = sphi 0, %s44
      %s45 = sphi 0, %s42
      %s46 = sphi 0, %s45
      %s62 = sphi 0, %s46
      %s68 = sphi 0, %s70
      %s71 = sphi 0, %s68
      %s72 = sphi 0, %s71
      %s88 = sphi 0, %s72
      %s94 = sphi 0, %s96
      %s97 = sphi 0, %s94
      %s98 = sphi 0, %s97
      %s114 = sphi 0, %s98
      %s120 = sphi 0, %s122
      %s123 = sphi 0, %s120
      %s124 = sphi 0, %s123
      %s140 = sphi 0, %s124
      %s144 = sphi 0, %s144
      %s146 = sphi 0, %s144
      %s147 = sphi 0, %s146
      %s161 = sphi 0, %s147
      %s167 = sphi 0, %s169
      %s170 = sphi 0, %s167
      %s171 = sphi 0, %s170
      %s187 = sphi 0, %s171
      %s193 = sphi 0, %s195
      %s196 = sphi 0, %s193
      %s197 = sphi 0, %s196
      %s213 = sphi 0, %s197
      %s219 = sphi 0, %s221
      %s222 = sphi 0, %s219
      %s223 = sphi 0, %s222
      %s239 = sphi 0, %s223
      %s243 = sphi 0, %s243
      %s245 = sphi 0, %s243
      %s246 = sphi 0, %s245
      %s260 = sphi 0, %s246
      %s264 = sphi 0, %s264
      %s266 = sphi 0, %s264
      %s267 = sphi 0, %s266
      %s281 = sphi 0, %s267
      %s287 = sphi 0, %s289
      %s290 = sphi 0, %s287
      %s291 = sphi 0, %s290
      %s307 = sphi 0, %s291
      %s315 = sphi 0, %s317
      %s318 = sphi 0, %s315
      %s319 = sphi 0, %s318
      %s335 = sphi 0, %s319
    $region4: #{tpu_custom_call.1} parent=1 // loop_header_branch
      %23 = sbr.rel (%p21) target = $region8
    $region5: #{tpu_custom_call.1} parent=1 // loop_body
      %s25 = ssub.s32 %s20, 1
      %s26 = ssub.s32 %s20, 2
      %s33 = sadd.s32 1, %s28
      %p34 = scmp.ge.s32.totalorder %s33, 4
      %s35 = scalar_select %p34, 0, %s33
      %s36 = sadd.s32 1, %s27
      %s37 = scalar_select %p34, %s36, %s27
      %p38 = scmp.ge.s32.totalorder %s37, 2
      %s39 = scalar_select %p38, 0, %s37
      %s40 = ssub.s32 %s27, %s39
      %p41 = scmp.eq.s32.totalorder %s40, 0
      %s43 = sadd.s32 %s42, 1
      %s44 = scalar_select %p41, %s42, %s43
      %p47 = pneg %p41
      %p48 = scmp.eq.s32.totalorder %s20, 7
      %p49 = por %p47, %p48
      %p50 = scmp.ne.s32.totalorder %s42, %s45
      %p51 = scmp.eq.s32.totalorder %s20, 0
      %p52 = por %p50, %p51
      %p53 = scmp.ne.s32.totalorder %s42, %s45
      %p54 = scmp.eq.s32.totalorder %s25, 7
      %p55 = por %p53, %p54
      %p56 = scmp.ne.s32.totalorder %s45, %s46
      %p57 = scmp.eq.s32.totalorder %s25, 0
      %p58 = por %p56, %p57
      %p59 = scmp.ne.s32.totalorder %s45, %s46
      %p60 = scmp.eq.s32.totalorder %s26, 7
      %p61 = por %p59, %p60
      %p63 = scmp.ne.s32.totalorder %s46, %s62
      %p64 = scmp.eq.s32.totalorder %s26, 0
      %p65 = por %p63, %p64
      %s66 = ssub.s32 %s28, %s35
      %p67 = scmp.eq.s32.totalorder %s66, 0
      %s69 = sadd.s32 %s68, 1
      %s70 = scalar_select %p67, %s68, %s69
      %p73 = pneg %p67
      %p74 = scmp.eq.s32.totalorder %s20, 7
      %p75 = por %p73, %p74
      %p76 = scmp.ne.s32.totalorder %s68, %s71
      %p77 = scmp.eq.s32.totalorder %s20, 0
      %p78 = por %p76, %p77
      %p79 = scmp.ne.s32.totalorder %s68, %s71
      %p80 = scmp.eq.s32.totalorder %s25, 7
      %p81 = por %p79, %p80
      %p82 = scmp.ne.s32.totalorder %s71, %s72
      %p83 = scmp.eq.s32.totalorder %s25, 0
      %p84 = por %p82, %p83
      %p85 = scmp.ne.s32.totalorder %s71, %s72
      %p86 = scmp.eq.s32.totalorder %s26, 7
      %p87 = por %p85, %p86
      %p89 = scmp.ne.s32.totalorder %s72, %s88
      %p90 = scmp.eq.s32.totalorder %s26, 0
      %p91 = por %p89, %p90
      %s92 = ssub.s32 %s28, %s35
      %p93 = scmp.eq.s32.totalorder %s92, 0
      %s95 = sadd.s32 %s94, 1
      %s96 = scalar_select %p93, %s94, %s95
      %p99 = pneg %p93
      %p100 = scmp.eq.s32.totalorder %s20, 7
      %p101 = por %p99, %p100
      %p102 = scmp.ne.s32.totalorder %s94, %s97
      %p103 = scmp.eq.s32.totalorder %s20, 0
      %p104 = por %p102, %p103
      %p105 = scmp.ne.s32.totalorder %s94, %s97
      %p106 = scmp.eq.s32.totalorder %s25, 7
      %p107 = por %p105, %p106
      %p108 = scmp.ne.s32.totalorder %s97, %s98
      %p109 = scmp.eq.s32.totalorder %s25, 0
      %p110 = por %p108, %p109
      %p111 = scmp.ne.s32.totalorder %s97, %s98
      %p112 = scmp.eq.s32.totalorder %s26, 7
      %p113 = por %p111, %p112
      %p115 = scmp.ne.s32.totalorder %s98, %s114
      %p116 = scmp.eq.s32.totalorder %s26, 0
      %p117 = por %p115, %p116
      %s118 = ssub.s32 %s28, %s35
      %p119 = scmp.eq.s32.totalorder %s118, 0
      %s121 = sadd.s32 %s120, 1
      %s122 = scalar_select %p119, %s120, %s121
      %p125 = pneg %p119
      %p126 = scmp.eq.s32.totalorder %s20, 7
      %p127 = por %p125, %p126
      %p128 = scmp.ne.s32.totalorder %s120, %s123
      %p129 = scmp.eq.s32.totalorder %s20, 0
      %p130 = por %p128, %p129
      %p131 = scmp.ne.s32.totalorder %s120, %s123
      %p132 = scmp.eq.s32.totalorder %s25, 7
      %p133 = por %p131, %p132
      %p134 = scmp.ne.s32.totalorder %s123, %s124
      %p135 = scmp.eq.s32.totalorder %s25, 0
      %p136 = por %p134, %p135
      %p137 = scmp.ne.s32.totalorder %s123, %s124
      %p138 = scmp.eq.s32.totalorder %s26, 7
      %p139 = por %p137, %p138
      %p141 = scmp.ne.s32.totalorder %s124, %s140
      %p142 = scmp.eq.s32.totalorder %s26, 0
      %p143 = por %p141, %p142
      %s145 = sadd.s32 %s144, 1
      %p148 = scmp.eq.s32.totalorder %s20, 7
      %p149 = scmp.ne.s32.totalorder %s144, %s146
      %p150 = scmp.eq.s32.totalorder %s20, 0
      %p151 = por %p149, %p150
      %p152 = scmp.ne.s32.totalorder %s144, %s146
      %p153 = scmp.eq.s32.totalorder %s25, 7
      %p154 = por %p152, %p153
      %p155 = scmp.ne.s32.totalorder %s146, %s147
      %p156 = scmp.eq.s32.totalorder %s25, 0
      %p157 = por %p155, %p156
      %p158 = scmp.ne.s32.totalorder %s146, %s147
      %p159 = scmp.eq.s32.totalorder %s26, 7
      %p160 = por %p158, %p159
      %p162 = scmp.ne.s32.totalorder %s147, %s161
      %p163 = scmp.eq.s32.totalorder %s26, 0
      %p164 = por %p162, %p163
      %s165 = ssub.s32 %s28, %s35
      %p166 = scmp.eq.s32.totalorder %s165, 0
      %s168 = sadd.s32 %s167, 1
      %s169 = scalar_select %p166, %s167, %s168
      %p172 = pneg %p166
      %p173 = scmp.eq.s32.totalorder %s20, 7
      %p174 = por %p172, %p173
      %p175 = scmp.ne.s32.totalorder %s167, %s170
      %p176 = scmp.eq.s32.totalorder %s20, 0
      %p177 = por %p175, %p176
      %p178 = scmp.ne.s32.totalorder %s167, %s170
      %p179 = scmp.eq.s32.totalorder %s25, 7
      %p180 = por %p178, %p179
      %p181 = scmp.ne.s32.totalorder %s170, %s171
      %p182 = scmp.eq.s32.totalorder %s25, 0
      %p183 = por %p181, %p182
      %p184 = scmp.ne.s32.totalorder %s170, %s171
      %p185 = scmp.eq.s32.totalorder %s26, 7
      %p186 = por %p184, %p185
      %p188 = scmp.ne.s32.totalorder %s171, %s187
      %p189 = scmp.eq.s32.totalorder %s26, 0
      %p190 = por %p188, %p189
      %s191 = ssub.s32 %s28, %s35
      %p192 = scmp.eq.s32.totalorder %s191, 0
      %s194 = sadd.s32 %s193, 1
      %s195 = scalar_select %p192, %s193, %s194
      %p198 = pneg %p192
      %p199 = scmp.eq.s32.totalorder %s20, 7
      %p200 = por %p198, %p199
      %p201 = scmp.ne.s32.totalorder %s193, %s196
      %p202 = scmp.eq.s32.totalorder %s20, 0
      %p203 = por %p201, %p202
      %p204 = scmp.ne.s32.totalorder %s193, %s196
      %p205 = scmp.eq.s32.totalorder %s25, 7
      %p206 = por %p204, %p205
      %p207 = scmp.ne.s32.totalorder %s196, %s197
      %p208 = scmp.eq.s32.totalorder %s25, 0
      %p209 = por %p207, %p208
      %p210 = scmp.ne.s32.totalorder %s196, %s197
      %p211 = scmp.eq.s32.totalorder %s26, 7
      %p212 = por %p210, %p211
      %p214 = scmp.ne.s32.totalorder %s197, %s213
      %p215 = scmp.eq.s32.totalorder %s26, 0
      %p216 = por %p214, %p215
      %s217 = ssub.s32 %s28, %s35
      %p218 = scmp.eq.s32.totalorder %s217, 0
      %s220 = sadd.s32 %s219, 1
      %s221 = scalar_select %p218, %s219, %s220
      %p224 = pneg %p218
      %p225 = scmp.eq.s32.totalorder %s20, 7
      %p226 = por %p224, %p225
      %p227 = scmp.ne.s32.totalorder %s219, %s222
      %p228 = scmp.eq.s32.totalorder %s20, 0
      %p229 = por %p227, %p228
      %p230 = scmp.ne.s32.totalorder %s219, %s222
      %p231 = scmp.eq.s32.totalorder %s25, 7
      %p232 = por %p230, %p231
      %p233 = scmp.ne.s32.totalorder %s222, %s223
      %p234 = scmp.eq.s32.totalorder %s25, 0
      %p235 = por %p233, %p234
      %p236 = scmp.ne.s32.totalorder %s222, %s223
      %p237 = scmp.eq.s32.totalorder %s26, 7
      %p238 = por %p236, %p237
      %p240 = scmp.ne.s32.totalorder %s223, %s239
      %p241 = scmp.eq.s32.totalorder %s26, 0
      %p242 = por %p240, %p241
      %s244 = sadd.s32 %s243, 1
      %p247 = scmp.eq.s32.totalorder %s20, 7
      %p248 = scmp.ne.s32.totalorder %s243, %s245
      %p249 = scmp.eq.s32.totalorder %s20, 0
      %p250 = por %p248, %p249
      %p251 = scmp.ne.s32.totalorder %s243, %s245
      %p252 = scmp.eq.s32.totalorder %s25, 7
      %p253 = por %p251, %p252
      %p254 = scmp.ne.s32.totalorder %s245, %s246
      %p255 = scmp.eq.s32.totalorder %s25, 0
      %p256 = por %p254, %p255
      %p257 = scmp.ne.s32.totalorder %s245, %s246
      %p258 = scmp.eq.s32.totalorder %s26, 7
      %p259 = por %p257, %p258
      %p261 = scmp.ne.s32.totalorder %s246, %s260
      %p262 = scmp.eq.s32.totalorder %s26, 0
      %p263 = por %p261, %p262
      %s265 = sadd.s32 %s264, 1
      %p268 = scmp.eq.s32.totalorder %s20, 7
      %p269 = scmp.ne.s32.totalorder %s264, %s266
      %p270 = scmp.eq.s32.totalorder %s20, 0
      %p271 = por %p269, %p270
      %p272 = scmp.ne.s32.totalorder %s264, %s266
      %p273 = scmp.eq.s32.totalorder %s25, 7
      %p274 = por %p272, %p273
      %p275 = scmp.ne.s32.totalorder %s266, %s267
      %p276 = scmp.eq.s32.totalorder %s25, 0
      %p277 = por %p275, %p276
      %p278 = scmp.ne.s32.totalorder %s266, %s267
      %p279 = scmp.eq.s32.totalorder %s26, 7
      %p280 = por %p278, %p279
      %p282 = scmp.ne.s32.totalorder %s267, %s281
      %p283 = scmp.eq.s32.totalorder %s26, 0
      %p284 = por %p282, %p283
      %s285 = ssub.s32 %s27, %s39
      %p286 = scmp.eq.s32.totalorder %s285, 0
      %s288 = sadd.s32 %s287, 1
      %s289 = scalar_select %p286, %s287, %s288
      %p292 = pneg %p286
      %p293 = scmp.eq.s32.totalorder %s20, 7
      %p294 = por %p292, %p293
      %p295 = scmp.ne.s32.totalorder %s287, %s290
      %p296 = scmp.eq.s32.totalorder %s20, 0
      %p297 = por %p295, %p296
      %p298 = scmp.ne.s32.totalorder %s287, %s290
      %p299 = scmp.eq.s32.totalorder %s25, 7
      %p300 = por %p298, %p299
      %p301 = scmp.ne.s32.totalorder %s290, %s291
      %p302 = scmp.eq.s32.totalorder %s25, 0
      %p303 = por %p301, %p302
      %p304 = scmp.ne.s32.totalorder %s290, %s291
      %p305 = scmp.eq.s32.totalorder %s26, 7
      %p306 = por %p304, %p305
      %p308 = scmp.ne.s32.totalorder %s291, %s307
      %p309 = scmp.eq.s32.totalorder %s26, 0
      %p310 = por %p308, %p309
      %s311 = ssub.s32 %s27, %s39
      %s312 = ssub.s32 %s28, %s35
      %s313 = sor.u32 %s311, %s312
      %p314 = scmp.eq.s32.totalorder %s313, 0
      %s316 = sadd.s32 %s315, 1
      %s317 = scalar_select %p314, %s315, %s316
      %p320 = pneg %p314
      %p321 = scmp.eq.s32.totalorder %s20, 7
      %p322 = por %p320, %p321
      %p323 = scmp.ne.s32.totalorder %s315, %s318
      %p324 = scmp.eq.s32.totalorder %s20, 0
      %p325 = por %p323, %p324
      %p326 = scmp.ne.s32.totalorder %s315, %s318
      %p327 = scmp.eq.s32.totalorder %s25, 7
      %p328 = por %p326, %p327
      %p329 = scmp.ne.s32.totalorder %s318, %s319
      %p330 = scmp.eq.s32.totalorder %s25, 0
      %p331 = por %p329, %p330
      %p332 = scmp.ne.s32.totalorder %s318, %s319
      %p333 = scmp.eq.s32.totalorder %s26, 7
      %p334 = por %p332, %p333
      %p336 = scmp.ne.s32.totalorder %s319, %s335
      %p337 = scmp.eq.s32.totalorder %s26, 0
      %p338 = por %p336, %p337
      %p339 = scmp.le.s32.totalorder 1, %s20
      %p340 = scmp.lt.s32.totalorder %s20, 9
      %p341 = pnand %p339, %p340
      %p342 = pneg %p341
      // Predicated region
      $region9: #{tpu_custom_call.1} parent=5 // pred_check
        _
      $region10: #{tpu_custom_call.1} parent=5 // pred_check_branch
        %344 = sbr.rel (%p341) target = $region12
      $region11: #{tpu_custom_call.1} parent=5 // pred_region
        %s345 = ssub.s32 %s20, 1
        // Predicated region
        $region13: #{tpu_custom_call.1} parent=11 // pred_check
          %p346 = pneg %p157
        $region14: #{tpu_custom_call.1} parent=11 // pred_check_branch
          %348 = sbr.rel (%p346) target = $region16
        $region15: #{tpu_custom_call.1} parent=11 // pred_region
          _
        $region16: #{tpu_custom_call.1} parent=11 // pred_fallthru
          _
        // Predicated region
        $region17: #{tpu_custom_call.1} parent=11 // pred_check
          %p349 = pneg %p256
        $region18: #{tpu_custom_call.1} parent=11 // pred_check_branch
          %351 = sbr.rel (%p349) target = $region20
        $region19: #{tpu_custom_call.1} parent=11 // pred_region
          _
        $region20: #{tpu_custom_call.1} parent=11 // pred_fallthru
          _
        // Predicated region
        $region21: #{tpu_custom_call.1} parent=11 // pred_check
          %p352 = pneg %p277
        $region22: #{tpu_custom_call.1} parent=11 // pred_check_branch
          %354 = sbr.rel (%p352) target = $region24
        $region23: #{tpu_custom_call.1} parent=11 // pred_region
          _
        $region24: #{tpu_custom_call.1} parent=11 // pred_fallthru
          _
      $region12: #{tpu_custom_call.1} parent=5 // pred_fallthru
        _
      %p355 = scmp.lt.s32.totalorder %s20, 8
      // Predicated region
      $region25: #{tpu_custom_call.1} parent=5 // pred_check
        %p356 = pneg %p355
      $region26: #{tpu_custom_call.1} parent=5 // pred_check_branch
        %358 = sbr.rel (%p356) target = $region28
      $region27: #{tpu_custom_call.1} parent=5 // pred_region
        // Predicated region
        $region29: #{tpu_custom_call.1} parent=27 // pred_check
          %p359 = pneg %p52
        $region30: #{tpu_custom_call.1} parent=27 // pred_check_branch
          %361 = sbr.rel (%p359) target = $region32
        $region31: #{tpu_custom_call.1} parent=27 // pred_region
          %p362 = scmp.lt.s32.totalorder %s27, 1
          %s363 = scalar_select %p362, %s27, 1
          %s364 = smul.addr %s363, 8
          %s365 = scalar_lea.vmem %s0, %s364
        $region32: #{tpu_custom_call.1} parent=27 // pred_fallthru
          _
        // Predicated region
        $region33: #{tpu_custom_call.1} parent=27 // pred_check
          %p366 = pneg %p78
        $region34: #{tpu_custom_call.1} parent=27 // pred_check_branch
          %368 = sbr.rel (%p366) target = $region36
        $region35: #{tpu_custom_call.1} parent=27 // pred_region
          %s369 = smul.u32 3, %s28
          %p370 = scmp.lt.s32.totalorder %s369, 11
          %s371 = scalar_select %p370, %s369, 11
          %s372 = smul.addr %s371, 8
          %s373 = scalar_lea.vmem %s1, %s372
          %s374 = smul.u32 3, %s28
        $region36: #{tpu_custom_call.1} parent=27 // pred_fallthru
          _
        // Predicated region
        $region37: #{tpu_custom_call.1} parent=27 // pred_check
          %p375 = pneg %p104
        $region38: #{tpu_custom_call.1} parent=27 // pred_check_branch
          %377 = sbr.rel (%p375) target = $region40
        $region39: #{tpu_custom_call.1} parent=27 // pred_region
          %p378 = scmp.lt.s32.totalorder %s28, 3
          %s379 = scalar_select %p378, %s28, 3
          %s380 = scalar_lea.vmem %s2, %s379
        $region40: #{tpu_custom_call.1} parent=27 // pred_fallthru
          _
        // Predicated region
        $region41: #{tpu_custom_call.1} parent=27 // pred_check
          %p381 = pneg %p130
        $region42: #{tpu_custom_call.1} parent=27 // pred_check_branch
          %383 = sbr.rel (%p381) target = $region44
        $region43: #{tpu_custom_call.1} parent=27 // pred_region
          %p384 = scmp.lt.s32.totalorder %s28, 3
          %s385 = scalar_select %p384, %s28, 3
          %s386 = scalar_lea.vmem %s3, %s385
        $region44: #{tpu_custom_call.1} parent=27 // pred_fallthru
          _
        // Predicated region
        $region45: #{tpu_custom_call.1} parent=27 // pred_check
          %p387 = pneg %p177
        $region46: #{tpu_custom_call.1} parent=27 // pred_check_branch
          %389 = sbr.rel (%p387) target = $region48
        $region47: #{tpu_custom_call.1} parent=27 // pred_region
          %p390 = scmp.lt.s32.totalorder %s28, 3
          %s391 = scalar_select %p390, %s28, 3
          %s392 = smul.addr %s391, 8
          %s393 = scalar_lea.vmem %s5, %s392
        $region48: #{tpu_custom_call.1} parent=27 // pred_fallthru
          _
        // Predicated region
        $region49: #{tpu_custom_call.1} parent=27 // pred_check
          %p394 = pneg %p203
        $region50: #{tpu_custom_call.1} parent=27 // pred_check_branch
          %396 = sbr.rel (%p394) target = $region52
        $region51: #{tpu_custom_call.1} parent=27 // pred_region
          %p397 = scmp.lt.s32.totalorder %s28, 3
          %s398 = scalar_select %p397, %s28, 3
          %s399 = smul.addr %s398, 8
          %s400 = scalar_lea.vmem %s6, %s399
        $region52: #{tpu_custom_call.1} parent=27 // pred_fallthru
          _
        // Predicated region
        $region53: #{tpu_custom_call.1} parent=27 // pred_check
          %p401 = pneg %p229
        $region54: #{tpu_custom_call.1} parent=27 // pred_check_branch
          %403 = sbr.rel (%p401) target = $region56
        $region55: #{tpu_custom_call.1} parent=27 // pred_region
          %p404 = scmp.lt.s32.totalorder %s28, 3
          %s405 = scalar_select %p404, %s28, 3
          %s406 = scalar_lea.vmem %s7, %s405
        $region56: #{tpu_custom_call.1} parent=27 // pred_fallthru
          _
        // Predicated region
        $region57: #{tpu_custom_call.1} parent=27 // pred_check
          %p407 = pneg %p297
        $region58: #{tpu_custom_call.1} parent=27 // pred_check_branch
          %409 = sbr.rel (%p407) target = $region60
        $region59: #{tpu_custom_call.1} parent=27 // pred_region
          %p410 = scmp.lt.s32.totalorder %s27, 1
          %s411 = scalar_select %p410, %s27, 1
          %s412 = smul.addr %s411, 8
          %s413 = scalar_lea.vmem %s10, %s412
        $region60: #{tpu_custom_call.1} parent=27 // pred_fallthru
          _
      $region28: #{tpu_custom_call.1} parent=5 // pred_fallthru
        _
      %p414 = scmp.le.s32.totalorder 1, %s20
      %p415 = scmp.lt.s32.totalorder %s20, 9
      %p416 = pnand %p414, %p415
      %p417 = pneg %p416
      // Predicated region
      $region61: #{tpu_custom_call.1} parent=5 // pred_check
        _
      $region62: #{tpu_custom_call.1} parent=5 // pred_check_branch
        %419 = sbr.rel (%p416) target = $region64
      $region63: #{tpu_custom_call.1} parent=5 // pred_region
        %s420 = ssub.s32 %s20, 1
        %p421 = scmp.lt.s32.totalorder %s29, 1
        %s422 = scalar_select %p421, %s29, 1
        %s423 = smul.addr %s422, 8
        %s424 = scalar_lea.vmem %s0, %s423
        %p425 = pneg %p58
        %p426 = pneg %p55
        %s427 = smul.u32 3, %s30
        %p428 = scmp.lt.s32.totalorder %s427, 11
        %s429 = scalar_select %p428, %s427, 11
        %s430 = smul.addr %s429, 8
        %s431 = scalar_lea.vmem %s1, %s430
        %p432 = pneg %p84
        %p433 = pneg %p81
        %p434 = scmp.lt.s32.totalorder %s30, 3
        %s435 = scalar_select %p434, %s30, 3
        %s436 = scalar_lea.vmem %s2, %s435
        %p437 = pneg %p110
        %p438 = pneg %p107
        %p439 = scmp.lt.s32.totalorder %s30, 3
        %s440 = scalar_select %p439, %s30, 3
        %s441 = scalar_lea.vmem %s3, %s440
        %p442 = pneg %p136
        %p443 = pneg %p133
        %p444 = pneg %p157
        %p445 = pneg %p154
        %p446 = scmp.lt.s32.totalorder %s30, 3
        %s447 = scalar_select %p446, %s30, 3
        %s448 = smul.addr %s447, 8
        %s449 = scalar_lea.vmem %s5, %s448
        %p450 = pneg %p183
        %p451 = pneg %p180
        %p452 = scmp.lt.s32.totalorder %s30, 3
        %s453 = scalar_select %p452, %s30, 3
        %s454 = smul.addr %s453, 8
        %s455 = scalar_lea.vmem %s6, %s454
        %p456 = pneg %p209
        %p457 = pneg %p206
        %p458 = scmp.lt.s32.totalorder %s30, 3
        %s459 = scalar_select %p458, %s30, 3
        %s460 = scalar_lea.vmem %s7, %s459
        %p461 = pneg %p235
        %p462 = pneg %p232
        %p463 = pneg %p256
        %p464 = pneg %p253
        %p465 = pneg %p277
        %p466 = pneg %p274
        %p467 = scmp.lt.s32.totalorder %s29, 1
        %s468 = scalar_select %p467, %s29, 1
        %s469 = smul.addr %s468, 8
        %s470 = scalar_lea.vmem %s10, %s469
        %p471 = pneg %p303
        %p472 = pneg %p300
        %p473 = pneg %p331
        %p474 = pneg %p328
        %s475 = sand.u32 %s318, 1
        %s476 = scalar_lea.sflag [#allocation3], %s475
        %s477 = sand.u32 %s318, 1
        %s478 = smul.addr %s477, 8
        %s479 = scalar_lea.vmem [#allocation2], %s478
        %p480 = scmp.lt.s32.totalorder %s29, 1
        %s481 = scalar_select %p480, %s29, 1
        %s482 = smul.addr %s481, 8
        %s483 = scalar_lea.vmem %s0, %s482
        %s484 = smul.u32 3, %s30
        %p485 = scmp.lt.s32.totalorder %s484, 11
        %s486 = scalar_select %p485, %s484, 11
        %s487 = smul.addr %s486, 8
        %s488 = scalar_lea.vmem %s1, %s487
        %s489 = smul.u32 3, %s30
        %p490 = scmp.lt.s32.totalorder %s30, 3
        %s491 = scalar_select %p490, %s30, 3
        %s492 = scalar_lea.vmem %s2, %s491
        %p493 = scmp.lt.s32.totalorder %s30, 3
        %s494 = scalar_select %p493, %s30, 3
        %s495 = scalar_lea.vmem %s3, %s494
        %p496 = scmp.lt.s32.totalorder %s30, 3
        %s497 = scalar_select %p496, %s30, 3
        %s498 = smul.addr %s497, 8
        %s499 = scalar_lea.vmem %s5, %s498
        %p500 = scmp.lt.s32.totalorder %s30, 3
        %s501 = scalar_select %p500, %s30, 3
        %s502 = smul.addr %s501, 8
        %s503 = scalar_lea.vmem %s6, %s502
        %p504 = scmp.lt.s32.totalorder %s30, 3
        %s505 = scalar_select %p504, %s30, 3
        %s506 = scalar_lea.vmem %s7, %s505
        %p507 = scmp.lt.s32.totalorder %s29, 1
        %s508 = scalar_select %p507, %s29, 1
        %s509 = smul.addr %s508, 8
        %s510 = scalar_lea.vmem %s10, %s509
        %v511 = vld [vmem:[%s483] sm:$0xff]
        %v512 = vld [vmem:[%s488] sm:$0xff]
        %v513 = vld [vmem:[%s488 + $0x8] sm:$0xff]
        %v514 = vld [vmem:[%s488 + $0x10] sm:$0xff]
        %vm515 = vcmask 261120
        %v517 = vsel %vm515, %v511, 0
        %v520 = vsel %vm515, %v513, 0
        %522 = vmatprep.subr.mxu0 0.0
        %523 = vmatpush1.xpose.msra.mxu0 %v520
        %524 = vmatprep.subr.mxu0 0.0
        %525 = vmatpush1.xpose.msra.mxu0 0.0
        %526 = vmatprep.subr.mxu0 0.0
        %527 = vmatpush1.xpose.msra.mxu0 0.0
        %528 = vmatprep.subr.mxu0 0.0
        %529 = vmatpush1.xpose.msra.mxu0 0.0
        %530 = vmatprep.subr.mxu0 0.0
        %531 = vmatpush1.xpose.msra.mxu0 0.0
        %532 = vmatprep.subr.mxu0 0.0
        %533 = vmatpush1.xpose.msra.mxu0 0.0
        %534 = vmatprep.subr.mxu0 0.0
        %535 = vmatpush1.xpose.msra.mxu0 0.0
        %536 = vmatprep.subr.mxu0 0.0
        %537 = vmatpush1.xpose.msra.mxu0 0.0
        %538 = vmatprep.subr.mxu0 0.0
        %539 = vmatpush1.xpose.msra.mxu0 0.0
        %540 = vmatprep.subr.mxu0 0.0
        %541 = vmatpush1.xpose.msra.mxu0 0.0
        %542 = vmatprep.subr.mxu0 0.0
        %543 = vmatpush1.xpose.msra.mxu0 0.0
        %544 = vmatprep.subr.mxu0 0.0
        %545 = vmatpush1.xpose.msra.mxu0 0.0
        %546 = vmatprep.subr.mxu0 0.0
        %547 = vmatpush1.xpose.msra.mxu0 0.0
        %548 = vmatprep.subr.mxu0 0.0
        %549 = vmatpush1.xpose.msra.mxu0 0.0
        %550 = vmatprep.subr.mxu0 0.0
        %551 = vmatpush1.xpose.msra.mxu0 0.0
        %552 = vmatprep.subr.mxu0 0.0
        %553 = vmatpush1.xpose.msra.mxu0 0.0
        %554 = vmatprep.subr.mxu0 0.0
        %555 = vmatpush1.xpose.msra.mxu0 0.0
        %556 = vmatprep.subr.mxu0 0.0
        %557 = vmatpush1.xpose.msra.mxu0 0.0
        %558 = vmatprep.subr.mxu0 0.0
        %559 = vmatpush1.xpose.msra.mxu0 0.0
        %560 = vmatprep.subr.mxu0 0.0
        %561 = vmatpush1.xpose.msra.mxu0 0.0
        %562 = vmatprep.subr.mxu0 0.0
        %563 = vmatpush1.xpose.msra.mxu0 0.0
        %564 = vmatprep.subr.mxu0 0.0
        %565 = vmatpush1.xpose.msra.mxu0 0.0
        %566 = vmatprep.subr.mxu0 0.0
        %567 = vmatpush1.xpose.msra.mxu0 0.0
        %568 = vmatprep.subr.mxu0 0.0
        %569 = vmatpush1.xpose.msra.mxu0 0.0
        %570 = vmatprep.subr.mxu0 0.0
        %571 = vmatpush1.xpose.msra.mxu0 0.0
        %572 = vmatprep.subr.mxu0 0.0
        %573 = vmatpush1.xpose.msra.mxu0 0.0
        %574 = vmatprep.subr.mxu0 0.0
        %575 = vmatpush1.xpose.msra.mxu0 0.0
        %576 = vmatprep.subr.mxu0 0.0
        %577 = vmatpush1.xpose.msra.mxu0 0.0
        %578 = vmatprep.subr.mxu0 0.0
        %579 = vmatpush1.xpose.msra.mxu0 0.0
        %580 = vmatprep.subr.mxu0 0.0
        %581 = vmatpush1.xpose.msra.mxu0 0.0
        %582 = vmatprep.subr.mxu0 0.0
        %583 = vmatpush1.xpose.msra.mxu0 0.0
        %584 = vmatprep.subr.mxu0 0.0
        %585 = vmatpush1.xpose.msra.mxu0 0.0
        %586 = vmatprep.mubr.f32.mxu0 0.0
        %587 = vmatmul.mubr.f32.gmra.mrb[0].mxu0 %v517
        %v588 = vpop.f32.mrb[0].mxu0
        %v589 = vadd.f32 0.0, %v588
        %v590 = vpop.f32.mrb[0].mxu0
        %591 = vdwg.mxu0
        %v592 = vld [vmem:[%s492] sm:$0x1]
        %v594 = vlaneseq
        %v595 = vshrl.u32 %v594, 7
        %v596 = vsub.s32 0, %v595
        %v597 = vrot.slane %v592, %v596
        %v600 = vsel %vm515, %v512, 0
        %602 = vmatprep.subr.mxu0 0.0
        %603 = vmatpush1.xpose.msra.mxu0 %v600
        %604 = vmatprep.subr.mxu0 0.0
        %605 = vmatpush1.xpose.msra.mxu0 0.0
        %606 = vmatprep.subr.mxu0 0.0
        %607 = vmatpush1.xpose.msra.mxu0 0.0
        %608 = vmatprep.subr.mxu0 0.0
        %609 = vmatpush1.xpose.msra.mxu0 0.0
        %610 = vmatprep.subr.mxu0 0.0
        %611 = vmatpush1.xpose.msra.mxu0 0.0
        %612 = vmatprep.subr.mxu0 0.0
        %613 = vmatpush1.xpose.msra.mxu0 0.0
        %614 = vmatprep.subr.mxu0 0.0
        %615 = vmatpush1.xpose.msra.mxu0 0.0
        %616 = vmatprep.subr.mxu0 0.0
        %617 = vmatpush1.xpose.msra.mxu0 0.0
        %618 = vmatprep.subr.mxu0 0.0
        %619 = vmatpush1.xpose.msra.mxu0 0.0
        %620 = vmatprep.subr.mxu0 0.0
        %621 = vmatpush1.xpose.msra.mxu0 0.0
        %622 = vmatprep.subr.mxu0 0.0
        %623 = vmatpush1.xpose.msra.mxu0 0.0
        %624 = vmatprep.subr.mxu0 0.0
        %625 = vmatpush1.xpose.msra.mxu0 0.0
        %626 = vmatprep.subr.mxu0 0.0
        %627 = vmatpush1.xpose.msra.mxu0 0.0
        %628 = vmatprep.subr.mxu0 0.0
        %629 = vmatpush1.xpose.msra.mxu0 0.0
        %630 = vmatprep.subr.mxu0 0.0
        %631 = vmatpush1.xpose.msra.mxu0 0.0
        %632 = vmatprep.subr.mxu0 0.0
        %633 = vmatpush1.xpose.msra.mxu0 0.0
        %634 = vmatprep.subr.mxu0 0.0
        %635 = vmatpush1.xpose.msra.mxu0 0.0
        %636 = vmatprep.subr.mxu0 0.0
        %637 = vmatpush1.xpose.msra.mxu0 0.0
        %638 = vmatprep.subr.mxu0 0.0
        %639 = vmatpush1.xpose.msra.mxu0 0.0
        %640 = vmatprep.subr.mxu0 0.0
        %641 = vmatpush1.xpose.msra.mxu0 0.0
        %642 = vmatprep.subr.mxu0 0.0
        %643 = vmatpush1.xpose.msra.mxu0 0.0
        %644 = vmatprep.subr.mxu0 0.0
        %645 = vmatpush1.xpose.msra.mxu0 0.0
        %646 = vmatprep.subr.mxu0 0.0
        %647 = vmatpush1.xpose.msra.mxu0 0.0
        %648 = vmatprep.subr.mxu0 0.0
        %649 = vmatpush1.xpose.msra.mxu0 0.0
        %650 = vmatprep.subr.mxu0 0.0
        %651 = vmatpush1.xpose.msra.mxu0 0.0
        %652 = vmatprep.subr.mxu0 0.0
        %653 = vmatpush1.xpose.msra.mxu0 0.0
        %654 = vmatprep.subr.mxu0 0.0
        %655 = vmatpush1.xpose.msra.mxu0 0.0
        %656 = vmatprep.subr.mxu0 0.0
        %657 = vmatpush1.xpose.msra.mxu0 0.0
        %658 = vmatprep.subr.mxu0 0.0
        %659 = vmatpush1.xpose.msra.mxu0 0.0
        %660 = vmatprep.subr.mxu0 0.0
        %661 = vmatpush1.xpose.msra.mxu0 0.0
        %662 = vmatprep.subr.mxu0 0.0
        %663 = vmatpush1.xpose.msra.mxu0 0.0
        %664 = vmatprep.subr.mxu0 0.0
        %665 = vmatpush1.xpose.msra.mxu0 0.0
        %666 = vmatprep.mubr.f32.mxu0 0.0
        %667 = vmatmul.mubr.f32.gmra.mrb[0].mxu0 %v517
        %v668 = vpop.f32.mrb[0].mxu0
        %v669 = vadd.f32 %v597, %v668
        %v670 = vpop.f32.mrb[0].mxu0
        %671 = vdwg.mxu0
        %v672 = vmul.f32 %v669, 0.20412415
        %v673 = vld [vmem:[%s495] sm:$0x1]
        %v675 = vlaneseq
        %v676 = vshrl.u32 %v675, 7
        %v677 = vsub.s32 0, %v676
        %v678 = vrot.slane %v673, %v677
        %v681 = vsel %vm515, %v514, 0
        %683 = vmatprep.subr.mxu0 0.0
        %684 = vmatpush1.xpose.msra.mxu0 %v681
        %685 = vmatprep.subr.mxu0 0.0
        %686 = vmatpush1.xpose.msra.mxu0 0.0
        %687 = vmatprep.subr.mxu0 0.0
        %688 = vmatpush1.xpose.msra.mxu0 0.0
        %689 = vmatprep.subr.mxu0 0.0
        %690 = vmatpush1.xpose.msra.mxu0 0.0
        %691 = vmatprep.subr.mxu0 0.0
        %692 = vmatpush1.xpose.msra.mxu0 0.0
        %693 = vmatprep.subr.mxu0 0.0
        %694 = vmatpush1.xpose.msra.mxu0 0.0
        %695 = vmatprep.subr.mxu0 0.0
        %696 = vmatpush1.xpose.msra.mxu0 0.0
        %697 = vmatprep.subr.mxu0 0.0
        %698 = vmatpush1.xpose.msra.mxu0 0.0
        %699 = vmatprep.subr.mxu0 0.0
        %700 = vmatpush1.xpose.msra.mxu0 0.0
        %701 = vmatprep.subr.mxu0 0.0
        %702 = vmatpush1.xpose.msra.mxu0 0.0
        %703 = vmatprep.subr.mxu0 0.0
        %704 = vmatpush1.xpose.msra.mxu0 0.0
        %705 = vmatprep.subr.mxu0 0.0
        %706 = vmatpush1.xpose.msra.mxu0 0.0
        %707 = vmatprep.subr.mxu0 0.0
        %708 = vmatpush1.xpose.msra.mxu0 0.0
        %709 = vmatprep.subr.mxu0 0.0
        %710 = vmatpush1.xpose.msra.mxu0 0.0
        %711 = vmatprep.subr.mxu0 0.0
        %712 = vmatpush1.xpose.msra.mxu0 0.0
        %713 = vmatprep.subr.mxu0 0.0
        %714 = vmatpush1.xpose.msra.mxu0 0.0
        %715 = vmatprep.subr.mxu0 0.0
        %716 = vmatpush1.xpose.msra.mxu0 0.0
        %717 = vmatprep.subr.mxu0 0.0
        %718 = vmatpush1.xpose.msra.mxu0 0.0
        %719 = vmatprep.subr.mxu0 0.0
        %720 = vmatpush1.xpose.msra.mxu0 0.0
        %721 = vmatprep.subr.mxu0 0.0
        %722 = vmatpush1.xpose.msra.mxu0 0.0
        %723 = vmatprep.subr.mxu0 0.0
        %724 = vmatpush1.xpose.msra.mxu0 0.0
        %725 = vmatprep.subr.mxu0 0.0
        %726 = vmatpush1.xpose.msra.mxu0 0.0
        %727 = vmatprep.subr.mxu0 0.0
        %728 = vmatpush1.xpose.msra.mxu0 0.0
        %729 = vmatprep.subr.mxu0 0.0
        %730 = vmatpush1.xpose.msra.mxu0 0.0
        %731 = vmatprep.subr.mxu0 0.0
        %732 = vmatpush1.xpose.msra.mxu0 0.0
        %733 = vmatprep.subr.mxu0 0.0
        %734 = vmatpush1.xpose.msra.mxu0 0.0
        %735 = vmatprep.subr.mxu0 0.0
        %736 = vmatpush1.xpose.msra.mxu0 0.0
        %737 = vmatprep.subr.mxu0 0.0
        %738 = vmatpush1.xpose.msra.mxu0 0.0
        %739 = vmatprep.subr.mxu0 0.0
        %740 = vmatpush1.xpose.msra.mxu0 0.0
        %741 = vmatprep.subr.mxu0 0.0
        %742 = vmatpush1.xpose.msra.mxu0 0.0
        %743 = vmatprep.subr.mxu0 0.0
        %744 = vmatpush1.xpose.msra.mxu0 0.0
        %745 = vmatprep.subr.mxu0 0.0
        %746 = vmatpush1.xpose.msra.mxu0 0.0
        %747 = vmatprep.mubr.f32.mxu0 0.0
        %748 = vmatmul.mubr.f32.gmra.mrb[0].mxu0 %v517
        %v749 = vpop.f32.mrb[0].mxu0
        %v750 = vadd.f32 %v678, %v749
        %v751 = vpop.f32.mrb[0].mxu0
        %752 = vdwg.mxu0
        %v753 = vld [vmem:[%s4] sm:$0xff]
        %v754 = vld [vmem:[%s4 + $0x8] sm:$0xff]
        %v755 = vlaneseq
        %v756 = vand.u32 %v755, 127
        %v757 = vld [vmem:[%s499] sm:$0xff]
        %v759 = vsel %vm515, %v753, 0
        %v762 = vsel %vm515, %v754, 0
        %v765 = vsel %vm515, %v757, 0
        %767 = vmatprep.subr.mxu0 0.0
        %768 = vmatpush1.xpose.msra.mxu0 %v765
        %769 = vmatprep.subr.mxu0 0.0
        %770 = vmatpush1.xpose.msra.mxu0 0.0
        %771 = vmatprep.subr.mxu0 0.0
        %772 = vmatpush1.xpose.msra.mxu0 0.0
        %773 = vmatprep.subr.mxu0 0.0
        %774 = vmatpush1.xpose.msra.mxu0 0.0
        %775 = vmatprep.subr.mxu0 0.0
        %776 = vmatpush1.xpose.msra.mxu0 0.0
        %777 = vmatprep.subr.mxu0 0.0
        %778 = vmatpush1.xpose.msra.mxu0 0.0
        %779 = vmatprep.subr.mxu0 0.0
        %780 = vmatpush1.xpose.msra.mxu0 0.0
        %781 = vmatprep.subr.mxu0 0.0
        %782 = vmatpush1.xpose.msra.mxu0 0.0
        %783 = vmatprep.subr.mxu0 0.0
        %784 = vmatpush1.xpose.msra.mxu0 0.0
        %785 = vmatprep.subr.mxu0 0.0
        %786 = vmatpush1.xpose.msra.mxu0 0.0
        %787 = vmatprep.subr.mxu0 0.0
        %788 = vmatpush1.xpose.msra.mxu0 0.0
        %789 = vmatprep.subr.mxu0 0.0
        %790 = vmatpush1.xpose.msra.mxu0 0.0
        %791 = vmatprep.subr.mxu0 0.0
        %792 = vmatpush1.xpose.msra.mxu0 0.0
        %793 = vmatprep.subr.mxu0 0.0
        %794 = vmatpush1.xpose.msra.mxu0 0.0
        %795 = vmatprep.subr.mxu0 0.0
        %796 = vmatpush1.xpose.msra.mxu0 0.0
        %797 = vmatprep.subr.mxu0 0.0
        %798 = vmatpush1.xpose.msra.mxu0 0.0
        %799 = vmatprep.subr.mxu0 0.0
        %800 = vmatpush1.xpose.msra.mxu0 0.0
        %801 = vmatprep.subr.mxu0 0.0
        %802 = vmatpush1.xpose.msra.mxu0 0.0
        %803 = vmatprep.subr.mxu0 0.0
        %804 = vmatpush1.xpose.msra.mxu0 0.0
        %805 = vmatprep.subr.mxu0 0.0
        %806 = vmatpush1.xpose.msra.mxu0 0.0
        %807 = vmatprep.subr.mxu0 0.0
        %808 = vmatpush1.xpose.msra.mxu0 0.0
        %809 = vmatprep.subr.mxu0 0.0
        %810 = vmatpush1.xpose.msra.mxu0 0.0
        %811 = vmatprep.subr.mxu0 0.0
        %812 = vmatpush1.xpose.msra.mxu0 0.0
        %813 = vmatprep.subr.mxu0 0.0
        %814 = vmatpush1.xpose.msra.mxu0 0.0
        %815 = vmatprep.subr.mxu0 0.0
        %816 = vmatpush1.xpose.msra.mxu0 0.0
        %817 = vmatprep.subr.mxu0 0.0
        %818 = vmatpush1.xpose.msra.mxu0 0.0
        %819 = vmatprep.subr.mxu0 0.0
        %820 = vmatpush1.xpose.msra.mxu0 0.0
        %821 = vmatprep.subr.mxu0 0.0
        %822 = vmatpush1.xpose.msra.mxu0 0.0
        %823 = vmatprep.subr.mxu0 0.0
        %824 = vmatpush1.xpose.msra.mxu0 0.0
        %825 = vmatprep.subr.mxu0 0.0
        %826 = vmatpush1.xpose.msra.mxu0 0.0
        %827 = vmatprep.subr.mxu0 0.0
        %828 = vmatpush1.xpose.msra.mxu0 0.0
        %829 = vmatprep.subr.mxu0 0.0
        %830 = vmatpush1.xpose.msra.mxu0 0.0
        %831 = vmatprep.mubr.f32.mxu0 0.0
        %832 = vmatmul.mubr.f32.gmra.mrb[0].mxu0 %v759
        %v833 = vpop.f32.mrb[0].mxu0
        %v834 = vadd.f32 0.0, %v833
        %v835 = vpop.f32.mrb[0].mxu0
        %836 = vmatprep.mubr.f32.mxu0 0.0
        %837 = vmatmul.mubr.f32.gmra.mrb[0].mxu0 %v762
        %v838 = vpop.f32.mrb[0].mxu0
        %v839 = vadd.f32 0.0, %v838
        %v840 = vpop.f32.mrb[0].mxu0
        %841 = vdwg.mxu0
        %vm842 = vcmask 64512
        %v844 = vsel %vm842, %v672, 0
        %v847 = vsel %vm842, %v834, 0
        %v850 = vsel %vm842, %v839, 0
        %852 = vmatprep.subr.mxu0 0.0
        %853 = vmatpush1.xpose.msra.mxu0 %v847
        %854 = vmatprep.subr.mxu0 0.0
        %855 = vmatpush1.xpose.msra.mxu0 %v850
        %856 = vmatprep.subr.mxu0 0.0
        %857 = vmatpush1.xpose.msra.mxu0 0.0
        %858 = vmatprep.subr.mxu0 0.0
        %859 = vmatpush1.xpose.msra.mxu0 0.0
        %860 = vmatprep.subr.mxu0 0.0
        %861 = vmatpush1.xpose.msra.mxu0 0.0
        %862 = vmatprep.subr.mxu0 0.0
        %863 = vmatpush1.xpose.msra.mxu0 0.0
        %864 = vmatprep.subr.mxu0 0.0
        %865 = vmatpush1.xpose.msra.mxu0 0.0
        %866 = vmatprep.subr.mxu0 0.0
        %867 = vmatpush1.xpose.msra.mxu0 0.0
        %868 = vmatprep.subr.mxu0 0.0
        %869 = vmatpush1.xpose.msra.mxu0 0.0
        %870 = vmatprep.subr.mxu0 0.0
        %871 = vmatpush1.xpose.msra.mxu0 0.0
        %872 = vmatprep.subr.mxu0 0.0
        %873 = vmatpush1.xpose.msra.mxu0 0.0
        %874 = vmatprep.subr.mxu0 0.0
        %875 = vmatpush1.xpose.msra.mxu0 0.0
        %876 = vmatprep.subr.mxu0 0.0
        %877 = vmatpush1.xpose.msra.mxu0 0.0
        %878 = vmatprep.subr.mxu0 0.0
        %879 = vmatpush1.xpose.msra.mxu0 0.0
        %880 = vmatprep.subr.mxu0 0.0
        %881 = vmatpush1.xpose.msra.mxu0 0.0
        %882 = vmatprep.subr.mxu0 0.0
        %883 = vmatpush1.xpose.msra.mxu0 0.0
        %884 = vmatprep.subr.mxu0 0.0
        %885 = vmatpush1.xpose.msra.mxu0 0.0
        %886 = vmatprep.subr.mxu0 0.0
        %887 = vmatpush1.xpose.msra.mxu0 0.0
        %888 = vmatprep.subr.mxu0 0.0
        %889 = vmatpush1.xpose.msra.mxu0 0.0
        %890 = vmatprep.subr.mxu0 0.0
        %891 = vmatpush1.xpose.msra.mxu0 0.0
        %892 = vmatprep.subr.mxu0 0.0
        %893 = vmatpush1.xpose.msra.mxu0 0.0
        %894 = vmatprep.subr.mxu0 0.0
        %895 = vmatpush1.xpose.msra.mxu0 0.0
        %896 = vmatprep.subr.mxu0 0.0
        %897 = vmatpush1.xpose.msra.mxu0 0.0
        %898 = vmatprep.subr.mxu0 0.0
        %899 = vmatpush1.xpose.msra.mxu0 0.0
        %900 = vmatprep.subr.mxu0 0.0
        %901 = vmatpush1.xpose.msra.mxu0 0.0
        %902 = vmatprep.subr.mxu0 0.0
        %903 = vmatpush1.xpose.msra.mxu0 0.0
        %904 = vmatprep.subr.mxu0 0.0
        %905 = vmatpush1.xpose.msra.mxu0 0.0
        %906 = vmatprep.subr.mxu0 0.0
        %907 = vmatpush1.xpose.msra.mxu0 0.0
        %908 = vmatprep.subr.mxu0 0.0
        %909 = vmatpush1.xpose.msra.mxu0 0.0
        %910 = vmatprep.subr.mxu0 0.0
        %911 = vmatpush1.xpose.msra.mxu0 0.0
        %912 = vmatprep.subr.mxu0 0.0
        %913 = vmatpush1.xpose.msra.mxu0 0.0
        %914 = vmatprep.subr.mxu0 0.0
        %915 = vmatpush1.xpose.msra.mxu0 0.0
        %916 = vmatprep.mubr.f32.mxu0 0.0
        %917 = vmatmul.mubr.f32.gmra.mrb[0].mxu0 %v844
        %v918 = vpop.f32.mrb[0].mxu0
        %v919 = vadd.f32 0.0, %v918
        %v920 = vpop.f32.mrb[0].mxu0
        %921 = vdwg.mxu0
        %v922 = vld [vmem:[%s8] sm:$0xff]
        %v923 = vlaneseq
        %v924 = vshrl.u32 %v923, 7
        %v925 = vsub.s32 0, %v924
        %v926 = vrot.slane %v922, %v925
        %928 = vbcast.lane.b32.xlu0 %v926, 256
        %v929 = vpop.permute.xlu0 %928
        %v930 = vlaneseq
        %v931 = vshrl.u32 %v930, 7
        %v932 = vsub.s32 1, %v931
        %v933 = vrot.slane %v922, %v932
        %935 = vbcast.lane.b32.xlu0 %v933, 256
        %v936 = vpop.permute.xlu0 %935
        %v937 = vlaneseq
        %v938 = vshrl.u32 %v937, 7
        %v939 = vsub.s32 2, %v938
        %v940 = vrot.slane %v922, %v939
        %942 = vbcast.lane.b32.xlu0 %v940, 256
        %v943 = vpop.permute.xlu0 %942
        %v944 = vlaneseq
        %v945 = vshrl.u32 %v944, 7
        %v946 = vsub.s32 3, %v945
        %v947 = vrot.slane %v922, %v946
        %949 = vbcast.lane.b32.xlu0 %v947, 256
        %v950 = vpop.permute.xlu0 %949
        %v951 = vlaneseq
        %v952 = vshrl.u32 %v951, 7
        %v953 = vsub.s32 4, %v952
        %v954 = vrot.slane %v922, %v953
        %956 = vbcast.lane.b32.xlu0 %v954, 256
        %v957 = vpop.permute.xlu0 %956
        %v958 = vlaneseq
        %v959 = vshrl.u32 %v958, 7
        %v960 = vsub.s32 5, %v959
        %v961 = vrot.slane %v922, %v960
        %963 = vbcast.lane.b32.xlu0 %v961, 256
        %v964 = vpop.permute.xlu0 %963
        %v965 = vlaneseq
        %v966 = vshrl.u32 %v965, 7
        %v967 = vsub.s32 6, %v966
        %v968 = vrot.slane %v922, %v967
        %970 = vbcast.lane.b32.xlu0 %v968, 256
        %v971 = vpop.permute.xlu0 %970
        %v972 = vlaneseq
        %v973 = vshrl.u32 %v972, 7
        %v974 = vsub.s32 7, %v973
        %v975 = vrot.slane %v922, %v974
        %977 = vbcast.lane.b32.xlu0 %v975, 256
        %v978 = vpop.permute.xlu0 %977
        %vm979 = vcmp.eq.s32.totalorder %v929, %v756
        %vm980 = vcmp.eq.s32.totalorder %v936, %v756
        %vm981 = vcmp.eq.s32.totalorder %v943, %v756
        %vm982 = vcmp.eq.s32.totalorder %v950, %v756
        %vm983 = vcmp.eq.s32.totalorder %v957, %v756
        %vm984 = vcmp.eq.s32.totalorder %v964, %v756
        %vm985 = vcmp.eq.s32.totalorder %v971, %v756
        %vm986 = vcmp.eq.s32.totalorder %v978, %v756
        %v987 = vsel %vm979, 1, 0
        %v988 = vsel %vm980, 1, 0
        %v989 = vsel %vm981, 1, 0
        %v990 = vsel %vm982, 1, 0
        %v991 = vsel %vm983, 1, 0
        %v992 = vsel %vm984, 1, 0
        %v993 = vsel %vm985, 1, 0
        %v994 = vsel %vm986, 1, 0
        %v995 = vcvt.s32.f32 %v987
        %v996 = vcvt.s32.f32 %v988
        %v997 = vcvt.s32.f32 %v989
        %v998 = vcvt.s32.f32 %v990
        %v999 = vcvt.s32.f32 %v991
        %v1000 = vcvt.s32.f32 %v992
        %v1001 = vcvt.s32.f32 %v993
        %v1002 = vcvt.s32.f32 %v994
        %v1004 = vcombine.high %v919, %v919
        %v1006 = vunpack.c.l.s4 1966171168
        %v1007 = vunpack.c.0.s8 %v1006
        %v1008 = vlaneseq
        %v1009 = vshrl.u32 %v1008, 7
        %v1010 = vsub.s32 %v1007, %v1009
        %v1011 = vrot.slane %v919, %v1010
        %v1013 = vunpack.c.l.s4 1966171168
        %v1014 = vunpack.c.0.s8 %v1013
        %v1015 = vlaneseq
        %v1016 = vshrl.u32 %v1015, 7
        %v1017 = vsub.s32 %v1014, %v1016
        %v1018 = vrot.slane %v1004, %v1017
        %v1019 = vcombine.high %v1011, %v1011
        %v1020 = vcombine.high %v1018, %v1018
        %v1022 = vunpack.c.l.s4 1966171168
        %v1023 = vunpack.c.0.s8 %v1022
        %v1024 = vlaneseq
        %v1025 = vshrl.u32 %v1024, 7
        %v1026 = vsub.s32 %v1023, %v1025
        %v1027 = vrot.slane %v1011, %v1026
        %v1029 = vunpack.c.l.s4 1966171168
        %v1030 = vunpack.c.0.s8 %v1029
        %v1031 = vlaneseq
        %v1032 = vshrl.u32 %v1031, 7
        %v1033 = vsub.s32 %v1030, %v1032
        %v1034 = vrot.slane %v1018, %v1033
        %v1036 = vunpack.c.l.s4 1966171168
        %v1037 = vunpack.c.0.s8 %v1036
        %v1038 = vlaneseq
        %v1039 = vshrl.u32 %v1038, 7
        %v1040 = vsub.s32 %v1037, %v1039
        %v1041 = vrot.slane %v1019, %v1040
        %v1043 = vunpack.c.l.s4 1966171168
        %v1044 = vunpack.c.0.s8 %v1043
        %v1045 = vlaneseq
        %v1046 = vshrl.u32 %v1045, 7
        %v1047 = vsub.s32 %v1044, %v1046
        %v1048 = vrot.slane %v1020, %v1047
        %v1049 = vcombine.high %v1027, %v1027
        %v1050 = vcombine.high %v1034, %v1034
        %v1051 = vcombine.high %v1041, %v1041
        %v1052 = vcombine.high %v1048, %v1048
        %v1053 = vlaneseq
        %v1054 = vshrl.u32 %v1053, 7
        %v1055 = vsub.s32 0, %v1054
        %v1056 = vrot.slane %v1027, %v1055
        %v1057 = vlaneseq
        %v1058 = vshrl.u32 %v1057, 7
        %v1059 = vsub.s32 0, %v1058
        %v1060 = vrot.slane %v1041, %v1059
        %v1061 = vlaneseq
        %v1062 = vshrl.u32 %v1061, 7
        %v1063 = vsub.s32 0, %v1062
        %v1064 = vrot.slane %v1049, %v1063
        %v1065 = vlaneseq
        %v1066 = vshrl.u32 %v1065, 7
        %v1067 = vsub.s32 0, %v1066
        %v1068 = vrot.slane %v1051, %v1067
        %v1069 = vlaneseq
        %v1070 = vshrl.u32 %v1069, 7
        %v1071 = vsub.s32 0, %v1070
        %v1072 = vrot.slane %v1034, %v1071
        %v1073 = vlaneseq
        %v1074 = vshrl.u32 %v1073, 7
        %v1075 = vsub.s32 0, %v1074
        %v1076 = vrot.slane %v1048, %v1075
        %v1077 = vlaneseq
        %v1078 = vshrl.u32 %v1077, 7
        %v1079 = vsub.s32 0, %v1078
        %v1080 = vrot.slane %v1050, %v1079
        %v1081 = vlaneseq
        %v1082 = vshrl.u32 %v1081, 7
        %v1083 = vsub.s32 0, %v1082
        %v1084 = vrot.slane %v1052, %v1083
        %v1093 = vmul.f32 %v1056, %v995
        %v1094 = vmul.f32 %v1060, %v996
        %v1095 = vmul.f32 %v1064, %v997
        %v1096 = vmul.f32 %v1068, %v998
        %v1097 = vmul.f32 %v1072, %v999
        %v1098 = vmul.f32 %v1076, %v1000
        %v1099 = vmul.f32 %v1080, %v1001
        %v1100 = vmul.f32 %v1084, %v1002
        %vm1101 = vcmask 130048
        %v1102 = vsel %vm1101, %v1093, 0.0
        %1103 = vadd.xlane.f32.xlu0 %v1102
        %v1104 = vpop.xlane.xlu0 %1103
        %v1105 = vsel %vm1101, %v1094, 0.0
        %1106 = vadd.xlane.f32.xlu0 %v1105
        %v1107 = vpop.xlane.xlu0 %1106
        %v1108 = vsel %vm1101, %v1095, 0.0
        %1109 = vadd.xlane.f32.xlu0 %v1108
        %v1110 = vpop.xlane.xlu0 %1109
        %v1111 = vsel %vm1101, %v1096, 0.0
        %1112 = vadd.xlane.f32.xlu0 %v1111
        %v1113 = vpop.xlane.xlu0 %1112
        %v1114 = vsel %vm1101, %v1097, 0.0
        %1115 = vadd.xlane.f32.xlu0 %v1114
        %v1116 = vpop.xlane.xlu0 %1115
        %v1117 = vsel %vm1101, %v1098, 0.0
        %1118 = vadd.xlane.f32.xlu0 %v1117
        %v1119 = vpop.xlane.xlu0 %1118
        %v1120 = vsel %vm1101, %v1099, 0.0
        %1121 = vadd.xlane.f32.xlu0 %v1120
        %v1122 = vpop.xlane.xlu0 %1121
        %v1123 = vsel %vm1101, %v1100, 0.0
        %1124 = vadd.xlane.f32.xlu0 %v1123
        %v1125 = vpop.xlane.xlu0 %1124
        %v1126 = vld [vmem:[%s503] sm:$0xff]
        %v1127 = vld [vmem:[%s506] sm:$0x1]
        %v1129 = vlaneseq
        %v1130 = vshrl.u32 %v1129, 7
        %v1131 = vsub.s32 0, %v1130
        %v1132 = vrot.slane %v1127, %v1131
        %v1135 = vsel %vm515, %v1126, 0
        %1137 = vmatprep.subr.mxu0 0.0
        %1138 = vmatpush1.xpose.msra.mxu0 %v1135
        %1139 = vmatprep.subr.mxu0 0.0
        %1140 = vmatpush1.xpose.msra.mxu0 0.0
        %1141 = vmatprep.subr.mxu0 0.0
        %1142 = vmatpush1.xpose.msra.mxu0 0.0
        %1143 = vmatprep.subr.mxu0 0.0
        %1144 = vmatpush1.xpose.msra.mxu0 0.0
        %1145 = vmatprep.subr.mxu0 0.0
        %1146 = vmatpush1.xpose.msra.mxu0 0.0
        %1147 = vmatprep.subr.mxu0 0.0
        %1148 = vmatpush1.xpose.msra.mxu0 0.0
        %1149 = vmatprep.subr.mxu0 0.0
        %1150 = vmatpush1.xpose.msra.mxu0 0.0
        %1151 = vmatprep.subr.mxu0 0.0
        %1152 = vmatpush1.xpose.msra.mxu0 0.0
        %1153 = vmatprep.subr.mxu0 0.0
        %1154 = vmatpush1.xpose.msra.mxu0 0.0
        %1155 = vmatprep.subr.mxu0 0.0
        %1156 = vmatpush1.xpose.msra.mxu0 0.0
        %1157 = vmatprep.subr.mxu0 0.0
        %1158 = vmatpush1.xpose.msra.mxu0 0.0
        %1159 = vmatprep.subr.mxu0 0.0
        %1160 = vmatpush1.xpose.msra.mxu0 0.0
        %1161 = vmatprep.subr.mxu0 0.0
        %1162 = vmatpush1.xpose.msra.mxu0 0.0
        %1163 = vmatprep.subr.mxu0 0.0
        %1164 = vmatpush1.xpose.msra.mxu0 0.0
        %1165 = vmatprep.subr.mxu0 0.0
        %1166 = vmatpush1.xpose.msra.mxu0 0.0
        %1167 = vmatprep.subr.mxu0 0.0
        %1168 = vmatpush1.xpose.msra.mxu0 0.0
        %1169 = vmatprep.subr.mxu0 0.0
        %1170 = vmatpush1.xpose.msra.mxu0 0.0
        %1171 = vmatprep.subr.mxu0 0.0
        %1172 = vmatpush1.xpose.msra.mxu0 0.0
        %1173 = vmatprep.subr.mxu0 0.0
        %1174 = vmatpush1.xpose.msra.mxu0 0.0
        %1175 = vmatprep.subr.mxu0 0.0
        %1176 = vmatpush1.xpose.msra.mxu0 0.0
        %1177 = vmatprep.subr.mxu0 0.0
        %1178 = vmatpush1.xpose.msra.mxu0 0.0
        %1179 = vmatprep.subr.mxu0 0.0
        %1180 = vmatpush1.xpose.msra.mxu0 0.0
        %1181 = vmatprep.subr.mxu0 0.0
        %1182 = vmatpush1.xpose.msra.mxu0 0.0
        %1183 = vmatprep.subr.mxu0 0.0
        %1184 = vmatpush1.xpose.msra.mxu0 0.0
        %1185 = vmatprep.subr.mxu0 0.0
        %1186 = vmatpush1.xpose.msra.mxu0 0.0
        %1187 = vmatprep.subr.mxu0 0.0
        %1188 = vmatpush1.xpose.msra.mxu0 0.0
        %1189 = vmatprep.subr.mxu0 0.0
        %1190 = vmatpush1.xpose.msra.mxu0 0.0
        %1191 = vmatprep.subr.mxu0 0.0
        %1192 = vmatpush1.xpose.msra.mxu0 0.0
        %1193 = vmatprep.subr.mxu0 0.0
        %1194 = vmatpush1.xpose.msra.mxu0 0.0
        %1195 = vmatprep.subr.mxu0 0.0
        %1196 = vmatpush1.xpose.msra.mxu0 0.0
        %1197 = vmatprep.subr.mxu0 0.0
        %1198 = vmatpush1.xpose.msra.mxu0 0.0
        %1199 = vmatprep.subr.mxu0 0.0
        %1200 = vmatpush1.xpose.msra.mxu0 0.0
        %1201 = vmatprep.mubr.f32.mxu0 0.0
        %1202 = vmatmul.mubr.f32.gmra.mrb[0].mxu0 %v759
        %v1203 = vpop.f32.mrb[0].mxu0
        %v1204 = vadd.f32 %v1132, %v1203
        %v1205 = vpop.f32.mrb[0].mxu0
        %1206 = vmatprep.mubr.f32.mxu0 0.0
        %1207 = vmatmul.mubr.f32.gmra.mrb[0].mxu0 %v762
        %v1208 = vpop.f32.mrb[0].mxu0
        %v1209 = vadd.f32 %v1132, %v1208
        %v1210 = vpop.f32.mrb[0].mxu0
        %1211 = vdwg.mxu0
        %v1212 = vmul.f32 %v1204, 0.20412415
        %v1213 = vmul.f32 %v1209, 0.20412415
        %v1215 = vsel %vm842, %v589, 0
        %v1218 = vsel %vm842, %v1212, 0
        %v1221 = vsel %vm842, %v1213, 0
        %1223 = vmatprep.subr.mxu0 0.0
        %1224 = vmatpush1.xpose.msra.mxu0 %v1218
        %1225 = vmatprep.subr.mxu0 0.0
        %1226 = vmatpush1.xpose.msra.mxu0 %v1221
        %1227 = vmatprep.subr.mxu0 0.0
        %1228 = vmatpush1.xpose.msra.mxu0 0.0
        %1229 = vmatprep.subr.mxu0 0.0
        %1230 = vmatpush1.xpose.msra.mxu0 0.0
        %1231 = vmatprep.subr.mxu0 0.0
        %1232 = vmatpush1.xpose.msra.mxu0 0.0
        %1233 = vmatprep.subr.mxu0 0.0
        %1234 = vmatpush1.xpose.msra.mxu0 0.0
        %1235 = vmatprep.subr.mxu0 0.0
        %1236 = vmatpush1.xpose.msra.mxu0 0.0
        %1237 = vmatprep.subr.mxu0 0.0
        %1238 = vmatpush1.xpose.msra.mxu0 0.0
        %1239 = vmatprep.subr.mxu0 0.0
        %1240 = vmatpush1.xpose.msra.mxu0 0.0
        %1241 = vmatprep.subr.mxu0 0.0
        %1242 = vmatpush1.xpose.msra.mxu0 0.0
        %1243 = vmatprep.subr.mxu0 0.0
        %1244 = vmatpush1.xpose.msra.mxu0 0.0
        %1245 = vmatprep.subr.mxu0 0.0
        %1246 = vmatpush1.xpose.msra.mxu0 0.0
        %1247 = vmatprep.subr.mxu0 0.0
        %1248 = vmatpush1.xpose.msra.mxu0 0.0
        %1249 = vmatprep.subr.mxu0 0.0
        %1250 = vmatpush1.xpose.msra.mxu0 0.0
        %1251 = vmatprep.subr.mxu0 0.0
        %1252 = vmatpush1.xpose.msra.mxu0 0.0
        %1253 = vmatprep.subr.mxu0 0.0
        %1254 = vmatpush1.xpose.msra.mxu0 0.0
        %1255 = vmatprep.subr.mxu0 0.0
        %1256 = vmatpush1.xpose.msra.mxu0 0.0
        %1257 = vmatprep.subr.mxu0 0.0
        %1258 = vmatpush1.xpose.msra.mxu0 0.0
        %1259 = vmatprep.subr.mxu0 0.0
        %1260 = vmatpush1.xpose.msra.mxu0 0.0
        %1261 = vmatprep.subr.mxu0 0.0
        %1262 = vmatpush1.xpose.msra.mxu0 0.0
        %1263 = vmatprep.subr.mxu0 0.0
        %1264 = vmatpush1.xpose.msra.mxu0 0.0
        %1265 = vmatprep.subr.mxu0 0.0
        %1266 = vmatpush1.xpose.msra.mxu0 0.0
        %1267 = vmatprep.subr.mxu0 0.0
        %1268 = vmatpush1.xpose.msra.mxu0 0.0
        %1269 = vmatprep.subr.mxu0 0.0
        %1270 = vmatpush1.xpose.msra.mxu0 0.0
        %1271 = vmatprep.subr.mxu0 0.0
        %1272 = vmatpush1.xpose.msra.mxu0 0.0
        %1273 = vmatprep.subr.mxu0 0.0
        %1274 = vmatpush1.xpose.msra.mxu0 0.0
        %1275 = vmatprep.subr.mxu0 0.0
        %1276 = vmatpush1.xpose.msra.mxu0 0.0
        %1277 = vmatprep.subr.mxu0 0.0
        %1278 = vmatpush1.xpose.msra.mxu0 0.0
        %1279 = vmatprep.subr.mxu0 0.0
        %1280 = vmatpush1.xpose.msra.mxu0 0.0
        %1281 = vmatprep.subr.mxu0 0.0
        %1282 = vmatpush1.xpose.msra.mxu0 0.0
        %1283 = vmatprep.subr.mxu0 0.0
        %1284 = vmatpush1.xpose.msra.mxu0 0.0
        %1285 = vmatprep.subr.mxu0 0.0
        %1286 = vmatpush1.xpose.msra.mxu0 0.0
        %1287 = vmatprep.mubr.f32.mxu0 0.0
        %1288 = vmatmul.mubr.f32.gmra.mrb[0].mxu0 %v1215
        %v1289 = vpop.f32.mrb[0].mxu0
        %v1290 = vadd.f32 0.0, %v1289
        %v1291 = vpop.f32.mrb[0].mxu0
        %1292 = vdwg.mxu0
        %v1293 = vld [vmem:[%s9] sm:$0xff]
        %v1294 = vlaneseq
        %v1295 = vshrl.u32 %v1294, 7
        %v1296 = vsub.s32 0, %v1295
        %v1297 = vrot.slane %v1293, %v1296
        %1299 = vbcast.lane.b32.xlu0 %v1297, 256
        %v1300 = vpop.permute.xlu0 %1299
        %v1301 = vlaneseq
        %v1302 = vshrl.u32 %v1301, 7
        %v1303 = vsub.s32 1, %v1302
        %v1304 = vrot.slane %v1293, %v1303
        %1306 = vbcast.lane.b32.xlu0 %v1304, 256
        %v1307 = vpop.permute.xlu0 %1306
        %v1308 = vlaneseq
        %v1309 = vshrl.u32 %v1308, 7
        %v1310 = vsub.s32 2, %v1309
        %v1311 = vrot.slane %v1293, %v1310
        %1313 = vbcast.lane.b32.xlu0 %v1311, 256
        %v1314 = vpop.permute.xlu0 %1313
        %v1315 = vlaneseq
        %v1316 = vshrl.u32 %v1315, 7
        %v1317 = vsub.s32 3, %v1316
        %v1318 = vrot.slane %v1293, %v1317
        %1320 = vbcast.lane.b32.xlu0 %v1318, 256
        %v1321 = vpop.permute.xlu0 %1320
        %v1322 = vlaneseq
        %v1323 = vshrl.u32 %v1322, 7
        %v1324 = vsub.s32 4, %v1323
        %v1325 = vrot.slane %v1293, %v1324
        %1327 = vbcast.lane.b32.xlu0 %v1325, 256
        %v1328 = vpop.permute.xlu0 %1327
        %v1329 = vlaneseq
        %v1330 = vshrl.u32 %v1329, 7
        %v1331 = vsub.s32 5, %v1330
        %v1332 = vrot.slane %v1293, %v1331
        %1334 = vbcast.lane.b32.xlu0 %v1332, 256
        %v1335 = vpop.permute.xlu0 %1334
        %v1336 = vlaneseq
        %v1337 = vshrl.u32 %v1336, 7
        %v1338 = vsub.s32 6, %v1337
        %v1339 = vrot.slane %v1293, %v1338
        %1341 = vbcast.lane.b32.xlu0 %v1339, 256
        %v1342 = vpop.permute.xlu0 %1341
        %v1343 = vlaneseq
        %v1344 = vshrl.u32 %v1343, 7
        %v1345 = vsub.s32 7, %v1344
        %v1346 = vrot.slane %v1293, %v1345
        %1348 = vbcast.lane.b32.xlu0 %v1346, 256
        %v1349 = vpop.permute.xlu0 %1348
        %vm1350 = vcmp.eq.s32.totalorder %v1300, %v756
        %vm1351 = vcmp.eq.s32.totalorder %v1307, %v756
        %vm1352 = vcmp.eq.s32.totalorder %v1314, %v756
        %vm1353 = vcmp.eq.s32.totalorder %v1321, %v756
        %vm1354 = vcmp.eq.s32.totalorder %v1328, %v756
        %vm1355 = vcmp.eq.s32.totalorder %v1335, %v756
        %vm1356 = vcmp.eq.s32.totalorder %v1342, %v756
        %vm1357 = vcmp.eq.s32.totalorder %v1349, %v756
        %v1358 = vsel %vm1350, 1, 0
        %v1359 = vsel %vm1351, 1, 0
        %v1360 = vsel %vm1352, 1, 0
        %v1361 = vsel %vm1353, 1, 0
        %v1362 = vsel %vm1354, 1, 0
        %v1363 = vsel %vm1355, 1, 0
        %v1364 = vsel %vm1356, 1, 0
        %v1365 = vsel %vm1357, 1, 0
        %v1366 = vcvt.s32.f32 %v1358
        %v1367 = vcvt.s32.f32 %v1359
        %v1368 = vcvt.s32.f32 %v1360
        %v1369 = vcvt.s32.f32 %v1361
        %v1370 = vcvt.s32.f32 %v1362
        %v1371 = vcvt.s32.f32 %v1363
        %v1372 = vcvt.s32.f32 %v1364
        %v1373 = vcvt.s32.f32 %v1365
        %v1374 = vmul.f32 %v1290, %v1366
        %v1375 = vmul.f32 %v1290, %v1367
        %v1376 = vmul.f32 %v1290, %v1368
        %v1377 = vmul.f32 %v1290, %v1369
        %v1378 = vmul.f32 %v1290, %v1370
        %v1379 = vmul.f32 %v1290, %v1371
        %v1380 = vmul.f32 %v1290, %v1372
        %v1381 = vmul.f32 %v1290, %v1373
        %v1382 = vsel %vm1101, %v1374, 0.0
        %1383 = vadd.xlane.f32.xlu0 %v1382
        %v1384 = vpop.xlane.xlu0 %1383
        %v1385 = vsel %vm1101, %v1375, 0.0
        %1386 = vadd.xlane.f32.xlu0 %v1385
        %v1387 = vpop.xlane.xlu0 %1386
        %v1388 = vsel %vm1101, %v1376, 0.0
        %1389 = vadd.xlane.f32.xlu0 %v1388
        %v1390 = vpop.xlane.xlu0 %1389
        %v1391 = vsel %vm1101, %v1377, 0.0
        %1392 = vadd.xlane.f32.xlu0 %v1391
        %v1393 = vpop.xlane.xlu0 %1392
        %v1394 = vsel %vm1101, %v1378, 0.0
        %1395 = vadd.xlane.f32.xlu0 %v1394
        %v1396 = vpop.xlane.xlu0 %1395
        %v1397 = vsel %vm1101, %v1379, 0.0
        %1398 = vadd.xlane.f32.xlu0 %v1397
        %v1399 = vpop.xlane.xlu0 %1398
        %v1400 = vsel %vm1101, %v1380, 0.0
        %1401 = vadd.xlane.f32.xlu0 %v1400
        %v1402 = vpop.xlane.xlu0 %1401
        %v1403 = vsel %vm1101, %v1381, 0.0
        %1404 = vadd.xlane.f32.xlu0 %v1403
        %v1405 = vpop.xlane.xlu0 %1404
        %v1414 = vlaneseq
        %v1415 = vshrl.u32 %v1414, 7
        %v1416 = vsub.s32 %v756, %v1415
        %v1417 = vrot.slane %v1104, %v1416
        %v1418 = vlaneseq
        %v1419 = vshrl.u32 %v1418, 7
        %v1420 = vsub.s32 %v756, %v1419
        %v1421 = vrot.slane %v1107, %v1420
        %v1422 = vlaneseq
        %v1423 = vshrl.u32 %v1422, 7
        %v1424 = vsub.s32 %v756, %v1423
        %v1425 = vrot.slane %v1110, %v1424
        %v1426 = vlaneseq
        %v1427 = vshrl.u32 %v1426, 7
        %v1428 = vsub.s32 %v756, %v1427
        %v1429 = vrot.slane %v1113, %v1428
        %v1430 = vlaneseq
        %v1431 = vshrl.u32 %v1430, 7
        %v1432 = vsub.s32 %v756, %v1431
        %v1433 = vrot.slane %v1116, %v1432
        %v1434 = vlaneseq
        %v1435 = vshrl.u32 %v1434, 7
        %v1436 = vsub.s32 %v756, %v1435
        %v1437 = vrot.slane %v1119, %v1436
        %v1438 = vlaneseq
        %v1439 = vshrl.u32 %v1438, 7
        %v1440 = vsub.s32 %v756, %v1439
        %v1441 = vrot.slane %v1122, %v1440
        %v1442 = vlaneseq
        %v1443 = vshrl.u32 %v1442, 7
        %v1444 = vsub.s32 %v756, %v1443
        %v1445 = vrot.slane %v1125, %v1444
        %vm1446 = vcmask 1041409
        %v1447 = vsel %vm1446, %v1421, %v1417
        %vm1448 = vcmask 1042434
        %v1449 = vsel %vm1448, %v1425, %v1447
        %vm1450 = vcmask 1043459
        %v1451 = vsel %vm1450, %v1429, %v1449
        %vm1452 = vcmask 1044484
        %v1453 = vsel %vm1452, %v1433, %v1451
        %vm1454 = vcmask 1045509
        %v1455 = vsel %vm1454, %v1437, %v1453
        %vm1456 = vcmask 1046534
        %v1457 = vsel %vm1456, %v1441, %v1455
        %vm1458 = vcmask 1047559
        %v1459 = vsel %vm1458, %v1445, %v1457
        %1461 = vmatprep.subr.mxu0 0.0
        %1462 = vmatpush1.xpose.msra.mxu0 %v1215
        %1463 = vmatprep.subr.mxu0 0.0
        %1464 = vmatpush1.xpose.msra.mxu0 0.0
        %1465 = vmatprep.subr.mxu0 0.0
        %1466 = vmatpush1.xpose.msra.mxu0 0.0
        %1467 = vmatprep.subr.mxu0 0.0
        %1468 = vmatpush1.xpose.msra.mxu0 0.0
        %1469 = vmatprep.subr.mxu0 0.0
        %1470 = vmatpush1.xpose.msra.mxu0 0.0
        %1471 = vmatprep.subr.mxu0 0.0
        %1472 = vmatpush1.xpose.msra.mxu0 0.0
        %1473 = vmatprep.subr.mxu0 0.0
        %1474 = vmatpush1.xpose.msra.mxu0 0.0
        %1475 = vmatprep.subr.mxu0 0.0
        %1476 = vmatpush1.xpose.msra.mxu0 0.0
        %1477 = vmatprep.subr.mxu0 0.0
        %1478 = vmatpush1.xpose.msra.mxu0 0.0
        %1479 = vmatprep.subr.mxu0 0.0
        %1480 = vmatpush1.xpose.msra.mxu0 0.0
        %1481 = vmatprep.subr.mxu0 0.0
        %1482 = vmatpush1.xpose.msra.mxu0 0.0
        %1483 = vmatprep.subr.mxu0 0.0
        %1484 = vmatpush1.xpose.msra.mxu0 0.0
        %1485 = vmatprep.subr.mxu0 0.0
        %1486 = vmatpush1.xpose.msra.mxu0 0.0
        %1487 = vmatprep.subr.mxu0 0.0
        %1488 = vmatpush1.xpose.msra.mxu0 0.0
        %1489 = vmatprep.subr.mxu0 0.0
        %1490 = vmatpush1.xpose.msra.mxu0 0.0
        %1491 = vmatprep.subr.mxu0 0.0
        %1492 = vmatpush1.xpose.msra.mxu0 0.0
        %1493 = vmatprep.subr.mxu0 0.0
        %1494 = vmatpush1.xpose.msra.mxu0 0.0
        %1495 = vmatprep.subr.mxu0 0.0
        %1496 = vmatpush1.xpose.msra.mxu0 0.0
        %1497 = vmatprep.subr.mxu0 0.0
        %1498 = vmatpush1.xpose.msra.mxu0 0.0
        %1499 = vmatprep.subr.mxu0 0.0
        %1500 = vmatpush1.xpose.msra.mxu0 0.0
        %1501 = vmatprep.subr.mxu0 0.0
        %1502 = vmatpush1.xpose.msra.mxu0 0.0
        %1503 = vmatprep.subr.mxu0 0.0
        %1504 = vmatpush1.xpose.msra.mxu0 0.0
        %1505 = vmatprep.subr.mxu0 0.0
        %1506 = vmatpush1.xpose.msra.mxu0 0.0
        %1507 = vmatprep.subr.mxu0 0.0
        %1508 = vmatpush1.xpose.msra.mxu0 0.0
        %1509 = vmatprep.subr.mxu0 0.0
        %1510 = vmatpush1.xpose.msra.mxu0 0.0
        %1511 = vmatprep.subr.mxu0 0.0
        %1512 = vmatpush1.xpose.msra.mxu0 0.0
        %1513 = vmatprep.subr.mxu0 0.0
        %1514 = vmatpush1.xpose.msra.mxu0 0.0
        %1515 = vmatprep.subr.mxu0 0.0
        %1516 = vmatpush1.xpose.msra.mxu0 0.0
        %1517 = vmatprep.subr.mxu0 0.0
        %1518 = vmatpush1.xpose.msra.mxu0 0.0
        %1519 = vmatprep.subr.mxu0 0.0
        %1520 = vmatpush1.xpose.msra.mxu0 0.0
        %1521 = vmatprep.subr.mxu0 0.0
        %1522 = vmatpush1.xpose.msra.mxu0 0.0
        %1523 = vmatprep.subr.mxu0 0.0
        %1524 = vmatpush1.xpose.msra.mxu0 0.0
        %1525 = vmatprep.mubr.f32.mxu0 0.0
        %1526 = vmatmul.mubr.f32.gmra.mrb[0].mxu0 %v844
        %v1527 = vpop.f32.mrb[0].mxu0
        %v1528 = vadd.f32 %v1459, %v1527
        %v1529 = vpop.f32.mrb[0].mxu0
        %1530 = vdwg.mxu0
        %v1539 = vlaneseq
        %v1540 = vshrl.u32 %v1539, 7
        %v1541 = vsub.s32 %v756, %v1540
        %v1542 = vrot.slane %v1384, %v1541
        %v1543 = vlaneseq
        %v1544 = vshrl.u32 %v1543, 7
        %v1545 = vsub.s32 %v756, %v1544
        %v1546 = vrot.slane %v1387, %v1545
        %v1547 = vlaneseq
        %v1548 = vshrl.u32 %v1547, 7
        %v1549 = vsub.s32 %v756, %v1548
        %v1550 = vrot.slane %v1390, %v1549
        %v1551 = vlaneseq
        %v1552 = vshrl.u32 %v1551, 7
        %v1553 = vsub.s32 %v756, %v1552
        %v1554 = vrot.slane %v1393, %v1553
        %v1555 = vlaneseq
        %v1556 = vshrl.u32 %v1555, 7
        %v1557 = vsub.s32 %v756, %v1556
        %v1558 = vrot.slane %v1396, %v1557
        %v1559 = vlaneseq
        %v1560 = vshrl.u32 %v1559, 7
        %v1561 = vsub.s32 %v756, %v1560
        %v1562 = vrot.slane %v1399, %v1561
        %v1563 = vlaneseq
        %v1564 = vshrl.u32 %v1563, 7
        %v1565 = vsub.s32 %v756, %v1564
        %v1566 = vrot.slane %v1402, %v1565
        %v1567 = vlaneseq
        %v1568 = vshrl.u32 %v1567, 7
        %v1569 = vsub.s32 %v756, %v1568
        %v1570 = vrot.slane %v1405, %v1569
        %v1571 = vsel %vm1446, %v1546, %v1542
        %v1572 = vsel %vm1448, %v1550, %v1571
        %v1573 = vsel %vm1450, %v1554, %v1572
        %v1574 = vsel %vm1452, %v1558, %v1573
        %v1575 = vsel %vm1454, %v1562, %v1574
        %v1576 = vsel %vm1456, %v1566, %v1575
        %v1577 = vsel %vm1458, %v1570, %v1576
        %v1579 = vadd.f32 %v1528, %v1577
        %v1580 = vld [vmem:[%s510] sm:$0xff]
        %vm1581 = vcmp.ne.s32.totalorder %v1580, 0
        %v1582 = vsel %vm1581, %v1579, -3.4028235e+38
        %v1583 = vsel %vm842, %v1582, -inf
        %1584 = vmax.xlane.f32.xlu0 %v1583
        %v1585 = vpop.xlane.xlu0 %1584
        %v1586 = vsub.f32 %v1582, %v1585
        %v1587 = vmul.f32 %v1586, 1.442695
        %v1588 = vpow.pop %v1587
        %v1589 = vsel %vm842, %v1588, 0.0
        %1590 = vadd.xlane.f32.xlu0 %v1589
        %v1591 = vpop.xlane.xlu0 %1590
        %v1592 = vrcp.pop %v1591
        %v1593 = vmul.f32 %v1588, %v1592
        %v1595 = vsel %vm842, %v1593, 0
        %1597 = vmatprep.subr.mxu0 0.0
        %1598 = vmatpush1.msra.mxu0 %v750
        %1599 = vmatprep.subr.mxu0 0.0
        %1600 = vmatpush1.msra.mxu0 0.0
        %1601 = vmatprep.subr.mxu0 0.0
        %1602 = vmatpush1.msra.mxu0 0.0
        %1603 = vmatprep.subr.mxu0 0.0
        %1604 = vmatpush1.msra.mxu0 0.0
        %1605 = vmatprep.subr.mxu0 0.0
        %1606 = vmatpush1.msra.mxu0 0.0
        %1607 = vmatprep.subr.mxu0 0.0
        %1608 = vmatpush1.msra.mxu0 0.0
        %1609 = vmatprep.subr.mxu0 0.0
        %1610 = vmatpush1.msra.mxu0 0.0
        %1611 = vmatprep.subr.mxu0 0.0
        %1612 = vmatpush1.msra.mxu0 0.0
        %1613 = vmatprep.subr.mxu0 0.0
        %1614 = vmatpush1.msra.mxu0 0.0
        %1615 = vmatprep.subr.mxu0 0.0
        %1616 = vmatpush1.msra.mxu0 0.0
        %1617 = vmatprep.subr.mxu0 0.0
        %1618 = vmatpush1.msra.mxu0 0.0
        %1619 = vmatprep.subr.mxu0 0.0
        %1620 = vmatpush1.msra.mxu0 0.0
        %1621 = vmatprep.subr.mxu0 0.0
        %1622 = vmatpush1.msra.mxu0 0.0
        %1623 = vmatprep.subr.mxu0 0.0
        %1624 = vmatpush1.msra.mxu0 0.0
        %1625 = vmatprep.subr.mxu0 0.0
        %1626 = vmatpush1.msra.mxu0 0.0
        %1627 = vmatprep.subr.mxu0 0.0
        %1628 = vmatpush1.msra.mxu0 0.0
        %1629 = vmatprep.subr.mxu0 0.0
        %1630 = vmatpush1.msra.mxu0 0.0
        %1631 = vmatprep.subr.mxu0 0.0
        %1632 = vmatpush1.msra.mxu0 0.0
        %1633 = vmatprep.subr.mxu0 0.0
        %1634 = vmatpush1.msra.mxu0 0.0
        %1635 = vmatprep.subr.mxu0 0.0
        %1636 = vmatpush1.msra.mxu0 0.0
        %1637 = vmatprep.subr.mxu0 0.0
        %1638 = vmatpush1.msra.mxu0 0.0
        %1639 = vmatprep.subr.mxu0 0.0
        %1640 = vmatpush1.msra.mxu0 0.0
        %1641 = vmatprep.subr.mxu0 0.0
        %1642 = vmatpush1.msra.mxu0 0.0
        %1643 = vmatprep.subr.mxu0 0.0
        %1644 = vmatpush1.msra.mxu0 0.0
        %1645 = vmatprep.subr.mxu0 0.0
        %1646 = vmatpush1.msra.mxu0 0.0
        %1647 = vmatprep.subr.mxu0 0.0
        %1648 = vmatpush1.msra.mxu0 0.0
        %1649 = vmatprep.subr.mxu0 0.0
        %1650 = vmatpush1.msra.mxu0 0.0
        %1651 = vmatprep.subr.mxu0 0.0
        %1652 = vmatpush1.msra.mxu0 0.0
        %1653 = vmatprep.subr.mxu0 0.0
        %1654 = vmatpush1.msra.mxu0 0.0
        %1655 = vmatprep.subr.mxu0 0.0
        %1656 = vmatpush1.msra.mxu0 0.0
        %1657 = vmatprep.subr.mxu0 0.0
        %1658 = vmatpush1.msra.mxu0 0.0
        %1659 = vmatprep.subr.mxu0 0.0
        %1660 = vmatpush1.msra.mxu0 0.0
        %1661 = vmatprep.mubr.f32.mxu0 0.0
        %1662 = vmatmul.mubr.f32.gmra.mrb[0].mxu0 %v1595
        %v1663 = vpop.f32.mrb[0].mxu0
        %v1664 = vadd.f32 0.0, %v1663
        %v1665 = vpop.f32.mrb[0].mxu0
        %1666 = vdwg.mxu0
        %1667 = vst.msk [vmem:[%s479] sm:$0xff] %vm842, %v1664
        %s1668 = sand.u32 %s318, 1
        %s1669 = scalar_lea.sflag [#allocation3], %s1668
        %s1670 = sand.u32 %s318, 1
        %s1671 = smul.addr %s1670, 8
        %s1672 = scalar_lea.vmem [#allocation2], %s1671
        // Predicated region
        $region65: #{tpu_custom_call.1} parent=63 // pred_check
          %p1673 = pneg %p328
        $region66: #{tpu_custom_call.1} parent=63 // pred_check_branch
          %1675 = sbr.rel (%p1673) target = $region68
        $region67: #{tpu_custom_call.1} parent=63 // pred_region
          %s1677 = ssub.s32 128, 128
          %1678 = vsyncadd %s1669, %s1677
          %s1679 = smul.addr %s29, 4
          %s1680 = sadd.s32 %s30, %s1679
          %s1681 = smul.addr %s1680, 128
          %s1682 = scalar_lea.hbm %s11, %s1681
          %s1684 = sshll.u32 %s1672, 4
          %s1685 = int_to_ptr.vmem [resolvable:$true] %s1684
          %1687 = dma.vmem_to_hbm [thread:$0]  %s1685, 128, %s1682, %s1669
        $region68: #{tpu_custom_call.1} parent=63 // pred_fallthru
          _
      $region64: #{tpu_custom_call.1} parent=5 // pred_fallthru
        _
      %p1688 = scmp.le.s32.totalorder 2, %s20
      // Predicated region
      $region69: #{tpu_custom_call.1} parent=5 // pred_check
        %p1689 = pneg %p1688
      $region70: #{tpu_custom_call.1} parent=5 // pred_check_branch
        %1691 = sbr.rel (%p1689) target = $region72
      $region71: #{tpu_custom_call.1} parent=5 // pred_region
        %s1692 = ssub.s32 %s20, 2
        // Predicated region
        $region73: #{tpu_custom_call.1} parent=71 // pred_check
          %p1693 = pneg %p334
        $region74: #{tpu_custom_call.1} parent=71 // pred_check_branch
          %1695 = sbr.rel (%p1693) target = $region76
        $region75: #{tpu_custom_call.1} parent=71 // pred_region
          %s1696 = sand.u32 %s319, 1
          %s1697 = scalar_lea.sflag [#allocation3], %s1696
          %s1698 = sand.u32 %s319, 1
          %s1699 = smul.addr %s1698, 8
          %s1700 = scalar_lea.vmem [#allocation2], %s1699
          %1701 = dma.done %s1697, 128
        $region76: #{tpu_custom_call.1} parent=71 // pred_fallthru
          _
      $region72: #{tpu_custom_call.1} parent=5 // pred_fallthru
        _
    $region6: #{tpu_custom_call.1} parent=1 // loop_footer
      %s24 = sadd.s32 1, %s20
    $region7: #{tpu_custom_call.1} parent=1 // loop_footer_branch
      %19 = sbr.rel target = $region3
    $region8: #{tpu_custom_call.1} parent=1 // loop_exit
      _
    %1702 = vsyncpa [#allocation3], 1
    %s1703 = scalar_lea.sflag [#allocation3], 1
    %1704 = vsyncpa %s1703, 1

</llo_original>
